<compile_context>
chip_gen: v7x
topology: tpu7x:2x2x1
jax: 0.10.0
libtpu: 0.0.40
codegen_flags: <defaults>
</compile_context>

<pallas_src>
import functools

import numpy as np
import jax
import jax.numpy as jnp
from jax import lax
from jax.experimental import pallas as pl
from jax.experimental.pallas import tpu as pltpu

NOTE_GROUP_SIZE = 10
X_MAX = 512.0
Y_MAX = 384.0
MAX_TICKS_FOR_DS = 1.0  # GAN_PARAMS['max_ticks_for_ds']


def _mapping_kernel(rel_s, tick_s, spos_s, rel_v, tick_v, var_ref, out_ref,
                    *, lmul, nfse, mtfd):
    """Pallas TPU kernel reproducing construct_map_with_sliders.

    rel_s : SMEM (6, N)  rows = [is_slider, slider_lengths, slider_types,
                                 slider_cos_each, slider_sin_each, note_distances]
    tick_s: SMEM (N,)    tick_diff (scalar reads in the serial loop)
    spos_s: SMEM (2,)    start_pos (px, py)
    rel_v : VMEM (6, N)  same data as rel_s, used for vectorized math
    tick_v: VMEM (1, N)  same data as tick_s
    var_ref: VMEM (B, 4N) random input tensor
    out_ref: VMEM (6, B, N)  -> wrapper transposes to (B, N, 6)
    lmul / nfse / mtfd : Python compile-time constants
    """
    B = var_ref.shape[0]
    N = var_ref.shape[1] // 4

    var = var_ref[...].astype(jnp.float32)
    cos_all = var[:, : 2 * N]
    sin_all = var[:, 2 * N:]
    inv_len = lax.rsqrt(cos_all * cos_all + sin_all * sin_all)
    cos_all = cos_all * inv_len
    sin_all = sin_all * inv_len

    c1 = cos_all[:, :N]          # (B, N) direction used on the distance-snap path
    s1 = sin_all[:, :N]
    c2 = cos_all[:, N:]          # (B, N) second half: slider / circle out-vector
    s2 = sin_all[:, N:]

    rel = rel_v[...]                              # (6, N)
    is_sl_row = rel[0:1, :] != 0.0                # (1, N) bool
    sln_row = rel[1:2, :]                         # slider lengths
    # rel[2, :] (slider_types) is unused, exactly as in the PyTorch code.
    scos_row = rel[3:4, :]
    ssin_row = rel[4:5, :]
    nd_row = rel[5:6, :]
    use_ds_row = tick_v[...] <= mtfd              # (1, N) bool

    # ---- hoisted, carry-independent full-width math over (B, N) ----
    l_row = lmul * nd_row                         # (1, N)
    rerand_x = 256.0 + 256.0 * var[:, :N]         # (B, N)
    rerand_y = 192.0 + 192.0 * var[:, 2 * N:3 * N]
    dvx = l_row * c1                              # (B, N)
    dvy = l_row * s1
    oa = c2 * scos_row - s2 * ssin_row            # slider out-vector
    ob = c2 * ssin_row + s2 * scos_row
    a_c = jnp.where(use_ds_row, c1, c2)           # circle out-vector
    b_c = jnp.where(use_ds_row, s1, s2)
    end_dx = c2 * sln_row                         # slider end offsets
    end_dy = s2 * sln_row

    # ---- sequential scan: only the cursor carry (px, py) stays per-note ----
    px = jnp.full((B, 1), spos_s[0], dtype=jnp.float32)
    py = jnp.full((B, 1), spos_s[1], dtype=jnp.float32)

    xs = []
    ys = []
    for k in range(N):                            # fully unrolled (N == 10)
        l_k = lmul * rel_s[5, k]                  # scalar SMEM read
        wall_l = 0.05 * X_MAX + l_k * 0.5
        wall_r = 0.95 * X_MAX - l_k * 0.5
        wall_t = 0.05 * Y_MAX + l_k * 0.5
        wall_b = 0.95 * Y_MAX - l_k * 0.5
        use_ds_k = tick_s[k] <= mtfd              # scalar bool

        dvx_k = dvx[:, k:k + 1]                   # (B, 1)
        dvy_k = dvy[:, k:k + 1]
        adx = jnp.abs(dvx_k)
        ady = jnp.abs(dvy_k)
        # sum-of-selects == original mask-multiply form, including the
        # strict-inequality (px == wall => delta 0) and degenerate-wall cases.
        x_delta = (jnp.where(px < wall_l, adx, 0.0)
                   - jnp.where(px > wall_r, adx, 0.0)
                   + jnp.where((px > wall_l) & (px < wall_r), dvx_k, 0.0))
        y_delta = (jnp.where(py < wall_t, ady, 0.0)
                   - jnp.where(py > wall_b, ady, 0.0)
                   + jnp.where((py > wall_t) & (py < wall_b), dvy_k, 0.0))

        _x = jnp.where(use_ds_k, px + x_delta, rerand_x[:, k:k + 1])
        _y = jnp.where(use_ds_k, py + y_delta, rerand_y[:, k:k + 1])
        xs.append(_x)
        ys.append(_y)

        if nfse:                                  # compile-time branch
            is_sl_k = rel_s[0, k] != 0.0
            px = jnp.where(is_sl_k, _x + end_dx[:, k:k + 1], _x)
            py = jnp.where(is_sl_k, _y + end_dy[:, k:k + 1], _y)
        else:
            px = _x
            py = _y

    X = jnp.concatenate(xs, axis=1)               # (B, N)
    Y = jnp.concatenate(ys, axis=1)
    Xe = X + end_dx                               # slider end positions
    Ye = Y + end_dy

    inv_xmax = 1.0 / X_MAX
    inv_ymax = 1.0 / Y_MAX
    col0 = X * inv_xmax                           # x_start
    col1 = Y * inv_ymax                           # y_start
    col2 = jnp.where(is_sl_row, oa, a_c)          # x_vec
    col3 = jnp.where(is_sl_row, ob, b_c)          # y_vec
    col4 = jnp.where(is_sl_row, Xe, X) * inv_xmax # x_end
    col5 = jnp.where(is_sl_row, Ye, Y) * inv_ymax # y_end

    # single store; component axis is major so no minor-dim relayout is needed
    out_ref[...] = jnp.stack([col0, col1, col2, col3, col4, col5], axis=0)


def custom_mapping_layer_forward(mapvars, rel, tick_diff, start_pos,
                                 length_multiplier, next_from_slider_end,
                                 max_ticks_for_ds=MAX_TICKS_FOR_DS):
    """Pallas-backed equivalent of PyTorchCustomMappingLayer.forward."""
    mapvars = jnp.asarray(mapvars, jnp.float32)
    B, four_n = mapvars.shape
    N = four_n // 4
    rel = jnp.asarray(rel, jnp.float32)
    tick = jnp.asarray(tick_diff, jnp.float32)
    spos = jnp.asarray(start_pos, jnp.float32)

    kernel = functools.partial(
        _mapping_kernel,
        lmul=float(length_multiplier),
        nfse=bool(next_from_slider_end),
        mtfd=float(max_ticks_for_ds),
    )
    out_6bn = pl.pallas_call(
        kernel,
        out_shape=jax.ShapeDtypeStruct((6, B, N), jnp.float32),
        in_specs=[
            pl.BlockSpec(memory_space=pltpu.MemorySpace.SMEM),   # rel (6, N)
            pl.BlockSpec(memory_space=pltpu.MemorySpace.SMEM),   # tick_diff (N,)
            pl.BlockSpec(memory_space=pltpu.MemorySpace.SMEM),   # start_pos (2,)
            pl.BlockSpec(memory_space=pltpu.MemorySpace.VMEM),   # rel (6, N) vector copy
            pl.BlockSpec(memory_space=pltpu.MemorySpace.VMEM),   # tick_diff (1, N)
            pl.BlockSpec(memory_space=pltpu.MemorySpace.VMEM),   # mapvars (B, 4N)
        ],
        out_specs=pl.BlockSpec(memory_space=pltpu.MemorySpace.VMEM),
    )(rel, tick, spos, rel, tick.reshape(1, N), mapvars)
    # (6, B, N) -> (B, N, 6), matching torch.stack(outputs).permute(1, 0, 2)
    return jnp.transpose(out_6bn, (1, 2, 0))


def _reference_forward(var, rel, tick_diff, start_pos, lmul, nfse, mtfd):
    """Pure-numpy reference mirroring construct_map_with_sliders (validation)."""
    var = np.asarray(var, np.float32)
    rel = np.asarray(rel, np.float32)
    B, four_n = var.shape
    N = four_n // 4
    cos_list = var[:, : 2 * N].copy()
    sin_list = var[:, 2 * N:].copy()
    ln = np.sqrt(cos_list ** 2 + sin_list ** 2)
    cos_list /= ln
    sin_list /= ln
    is_slider, sln_arr, _, scos_arr, ssin_arr, nd_arr = rel
    px = np.full((B,), start_pos[0], np.float32)
    py = np.full((B,), start_pos[1], np.float32)
    outs = []
    for k in range(N):
        l_k = lmul * nd_arr[k]
        wall_l = 0.05 * 512 + l_k * 0.5
        wall_r = 0.95 * 512 - l_k * 0.5
        wall_t = 0.05 * 384 + l_k * 0.5
        wall_b = 0.95 * 384 - l_k * 0.5
        use_ds = np.float32(tick_diff[k] <= mtfd)
        rerand, not_rerand = 1.0 - use_ds, use_ds
        rerand_x = 256 + 256 * var[:, k]
        rerand_y = 192 + 192 * var[:, k + 2 * N]
        dvx = l_k * cos_list[:, k]
        dvy = l_k * sin_list[:, k]
        xd = (np.abs(dvx) * (px < wall_l) - np.abs(dvx) * (px > wall_r)
              + dvx * ((px > wall_l) * (px < wall_r)))
        yd = (np.abs(dvy) * (py < wall_t) - np.abs(dvy) * (py > wall_b)
              + dvy * ((py > wall_t) * (py < wall_b)))
        _x = rerand * rerand_x + not_rerand * (px + xd)
        _y = rerand * rerand_y + not_rerand * (py + yd)
        a_s, b_s = cos_list[:, k + N], sin_list[:, k + N]
        oa = a_s * scos_arr[k] - b_s * ssin_arr[k]
        ob = a_s * ssin_arr[k] + b_s * scos_arr[k]
        cp_slider = np.stack([_x / 512, _y / 384, oa, ob,
                              (_x + a_s * sln_arr[k]) / 512,
                              (_y + b_s * sln_arr[k]) / 384], axis=-1)
        px_sl = (_x + a_s * sln_arr[k]) if nfse else _x
        py_sl = (_y + b_s * sln_arr[k]) if nfse else _y
        a_c = rerand * cos_list[:, k + N] + not_rerand * cos_list[:, k]
        b_c = rerand * sin_list[:, k + N] + not_rerand * sin_list[:, k]
        cp_circle = np.stack([_x / 512, _y / 384, a_c, b_c, _x / 512, _y / 384], axis=-1)
        sl = bool(is_slider[k] != 0)
        outs.append(cp_slider if sl else cp_circle)
        px = px_sl if sl else _x
        py = py_sl if sl else _y
    return np.stack(outs).transpose(1, 0, 2)


if __name__ == "__main__":
    key = jax.random.PRNGKey(0)
    B, N = 2, NOTE_GROUP_SIZE

    # input mapvars: (B, 4*N), same shape the GAN generator would produce
    mapvars = jax.random.normal(key, (B, 4 * N), dtype=jnp.float32)

    # deterministic synthetic "extvar" parameters (shapes from the module __init__)
    is_slider = jnp.array([1, 0, 1, 0, 1, 1, 0, 0, 1, 0], jnp.float32)
    slider_lengths = jnp.linspace(20.0, 80.0, N, dtype=jnp.float32)
    slider_types = jnp.zeros((N,), jnp.float32)
    angles = jnp.linspace(0.0, 2.0 * np.pi, N, endpoint=False, dtype=jnp.float32)
    slider_cos = jnp.cos(angles)
    slider_sin = jnp.sin(angles)
    note_distances = jnp.linspace(80.0, 180.0, N, dtype=jnp.float32)
    rel = jnp.stack([is_slider, slider_lengths, slider_types,
                     slider_cos, slider_sin, note_distances], axis=0)  # (6, N)
    tick_diff = jnp.array([0, 2, 0, 1, 3, 0, 2, 0, 1, 0], jnp.float32)
    start_pos = jnp.array([256.0, 192.0], jnp.float32)
    length_multiplier = 1.0

    # next_from_slider_end = False (default GAN_PARAMS path)
    out = custom_mapping_layer_forward(
        mapvars, rel, tick_diff, start_pos,
        length_multiplier, False, MAX_TICKS_FOR_DS)
    out = jax.block_until_ready(out)
    ref = _reference_forward(np.asarray(mapvars), np.asarray(rel),
                             np.asarray(tick_diff), np.asarray(start_pos),
                             length_multiplier, False, MAX_TICKS_FOR_DS)
    assert out.shape == (B, N, 6), out.shape
    np.testing.assert_allclose(np.asarray(out), ref, rtol=1e-4, atol=1e-4)

    # also exercise the next_from_slider_end = True compile-time branch
    out2 = custom_mapping_layer_forward(
        mapvars, rel, tick_diff, start_pos,
        length_multiplier, True, MAX_TICKS_FOR_DS)
    out2 = jax.block_until_ready(out2)
    ref2 = _reference_forward(np.asarray(mapvars), np.asarray(rel),
                              np.asarray(tick_diff), np.asarray(start_pos),
                              length_multiplier, True, MAX_TICKS_FOR_DS)
    np.testing.assert_allclose(np.asarray(out2), ref2, rtol=1e-4, atol=1e-4)

    print("KERNEL_OK")
</pallas_src>

<mosaic_0001>
module attributes {stable_mosaic.version = 11 : i64} {
  func.func @_mapping_kernel(%arg0: memref<6x10xf32, #tpu.memory_space<smem>>, %arg1: memref<10xf32, #tpu.memory_space<smem>>, %arg2: memref<2xf32, #tpu.memory_space<smem>>, %arg3: memref<6x10xf32, #tpu.memory_space<vmem>>, %arg4: memref<1x10xf32, #tpu.memory_space<vmem>>, %arg5: memref<2x40xf32, #tpu.memory_space<vmem>>, %arg6: memref<6x2x10xf32, #tpu.memory_space<vmem>>) attributes {dimension_semantics = [], scalar_prefetch = 0 : i64, scratch_operands = 0 : i64, tpu.core_type = #tpu.core_type<tc>} {
    %c0 = arith.constant 0 : index
    %c0_0 = arith.constant 0 : index
    %0 = vector.load %arg5[%c0, %c0_0] : memref<2x40xf32, #tpu.memory_space<vmem>>, vector<2x40xf32>
    %1 = vector.extract_strided_slice %0 {offsets = [0, 0], sizes = [2, 20], strides = [1, 1]} : vector<2x40xf32> to vector<2x20xf32>
    %2 = vector.extract_strided_slice %0 {offsets = [0, 20], sizes = [2, 20], strides = [1, 1]} : vector<2x40xf32> to vector<2x20xf32>
    %3 = arith.mulf %1, %1 : vector<2x20xf32>
    %4 = arith.mulf %2, %2 : vector<2x20xf32>
    %5 = arith.addf %3, %4 : vector<2x20xf32>
    %6 = math.rsqrt %5 : vector<2x20xf32>
    %7 = arith.mulf %1, %6 : vector<2x20xf32>
    %8 = arith.mulf %2, %6 : vector<2x20xf32>
    %9 = vector.extract_strided_slice %7 {offsets = [0, 0], sizes = [2, 10], strides = [1, 1]} : vector<2x20xf32> to vector<2x10xf32>
    %10 = vector.extract_strided_slice %8 {offsets = [0, 0], sizes = [2, 10], strides = [1, 1]} : vector<2x20xf32> to vector<2x10xf32>
    %11 = vector.extract_strided_slice %7 {offsets = [0, 10], sizes = [2, 10], strides = [1, 1]} : vector<2x20xf32> to vector<2x10xf32>
    %12 = vector.extract_strided_slice %8 {offsets = [0, 10], sizes = [2, 10], strides = [1, 1]} : vector<2x20xf32> to vector<2x10xf32>
    %c0_1 = arith.constant 0 : index
    %c0_2 = arith.constant 0 : index
    %13 = vector.load %arg3[%c0_1, %c0_2] : memref<6x10xf32, #tpu.memory_space<vmem>>, vector<6x10xf32>
    %14 = vector.extract_strided_slice %13 {offsets = [0, 0], sizes = [1, 10], strides = [1, 1]} : vector<6x10xf32> to vector<1x10xf32>
    %cst = arith.constant 0.000000e+00 : f32
    %15 = vector.broadcast %cst : f32 to vector<1x10xf32>
    %16 = arith.cmpf one, %14, %15 : vector<1x10xf32>
    %17 = vector.extract_strided_slice %13 {offsets = [1, 0], sizes = [1, 10], strides = [1, 1]} : vector<6x10xf32> to vector<1x10xf32>
    %18 = vector.extract_strided_slice %13 {offsets = [3, 0], sizes = [1, 10], strides = [1, 1]} : vector<6x10xf32> to vector<1x10xf32>
    %19 = vector.extract_strided_slice %13 {offsets = [4, 0], sizes = [1, 10], strides = [1, 1]} : vector<6x10xf32> to vector<1x10xf32>
    %20 = vector.extract_strided_slice %13 {offsets = [5, 0], sizes = [1, 10], strides = [1, 1]} : vector<6x10xf32> to vector<1x10xf32>
    %c0_3 = arith.constant 0 : index
    %c0_4 = arith.constant 0 : index
    %21 = vector.load %arg4[%c0_3, %c0_4] : memref<1x10xf32, #tpu.memory_space<vmem>>, vector<1x10xf32>
    %cst_5 = arith.constant 1.000000e+00 : f32
    %22 = vector.broadcast %cst_5 : f32 to vector<1x10xf32>
    %23 = arith.cmpf ole, %21, %22 : vector<1x10xf32>
    %cst_6 = arith.constant 1.000000e+00 : f32
    %24 = vector.broadcast %cst_6 : f32 to vector<1x10xf32>
    %25 = arith.mulf %24, %20 : vector<1x10xf32>
    %26 = vector.extract_strided_slice %0 {offsets = [0, 0], sizes = [2, 10], strides = [1, 1]} : vector<2x40xf32> to vector<2x10xf32>
    %cst_7 = arith.constant 2.560000e+02 : f32
    %27 = vector.broadcast %cst_7 : f32 to vector<2x10xf32>
    %28 = arith.mulf %27, %26 : vector<2x10xf32>
    %cst_8 = arith.constant 2.560000e+02 : f32
    %29 = vector.broadcast %cst_8 : f32 to vector<2x10xf32>
    %30 = arith.addf %29, %28 : vector<2x10xf32>
    %31 = vector.extract_strided_slice %0 {offsets = [0, 20], sizes = [2, 10], strides = [1, 1]} : vector<2x40xf32> to vector<2x10xf32>
    %cst_9 = arith.constant 1.920000e+02 : f32
    %32 = vector.broadcast %cst_9 : f32 to vector<2x10xf32>
    %33 = arith.mulf %32, %31 : vector<2x10xf32>
    %cst_10 = arith.constant 1.920000e+02 : f32
    %34 = vector.broadcast %cst_10 : f32 to vector<2x10xf32>
    %35 = arith.addf %34, %33 : vector<2x10xf32>
    %36 = vector.broadcast %25 : vector<1x10xf32> to vector<2x10xf32>
    %37 = arith.mulf %36, %9 : vector<2x10xf32>
    %38 = vector.broadcast %25 : vector<1x10xf32> to vector<2x10xf32>
    %39 = arith.mulf %38, %10 : vector<2x10xf32>
    %40 = vector.broadcast %18 : vector<1x10xf32> to vector<2x10xf32>
    %41 = arith.mulf %11, %40 : vector<2x10xf32>
    %42 = vector.broadcast %19 : vector<1x10xf32> to vector<2x10xf32>
    %43 = arith.mulf %12, %42 : vector<2x10xf32>
    %44 = arith.subf %41, %43 : vector<2x10xf32>
    %45 = vector.broadcast %19 : vector<1x10xf32> to vector<2x10xf32>
    %46 = arith.mulf %11, %45 : vector<2x10xf32>
    %47 = vector.broadcast %18 : vector<1x10xf32> to vector<2x10xf32>
    %48 = arith.mulf %12, %47 : vector<2x10xf32>
    %49 = arith.addf %46, %48 : vector<2x10xf32>
    %50 = vector.shape_cast %23 : vector<1x10xi1> to vector<1x10xi1>
    %51 = vector.broadcast %50 : vector<1x10xi1> to vector<2x10xi1>
    %52 = arith.select %51, %9, %11 : vector<2x10xi1>, vector<2x10xf32>
    %53 = vector.shape_cast %23 : vector<1x10xi1> to vector<1x10xi1>
    %54 = vector.broadcast %53 : vector<1x10xi1> to vector<2x10xi1>
    %55 = arith.select %54, %10, %12 : vector<2x10xi1>, vector<2x10xf32>
    %56 = vector.broadcast %17 : vector<1x10xf32> to vector<2x10xf32>
    %57 = arith.mulf %11, %56 : vector<2x10xf32>
    %58 = vector.broadcast %17 : vector<1x10xf32> to vector<2x10xf32>
    %59 = arith.mulf %12, %58 : vector<2x10xf32>
    %c0_11 = arith.constant 0 : index
    %60 = memref.load %arg2[%c0_11] : memref<2xf32, #tpu.memory_space<smem>>
    %61 = vector.broadcast %60 : f32 to vector<2x1xf32>
    %c1 = arith.constant 1 : index
    %62 = memref.load %arg2[%c1] : memref<2xf32, #tpu.memory_space<smem>>
    %63 = vector.broadcast %62 : f32 to vector<2x1xf32>
    %c5 = arith.constant 5 : index
    %c0_12 = arith.constant 0 : index
    %64 = memref.load %arg0[%c5, %c0_12] : memref<6x10xf32, #tpu.memory_space<smem>>
    %cst_13 = arith.constant 1.000000e+00 : f32
    %65 = arith.mulf %cst_13, %64 : f32
    %cst_14 = arith.constant 5.000000e-01 : f32
    %66 = arith.mulf %65, %cst_14 : f32
    %cst_15 = arith.constant 2.560000e+01 : f32
    %67 = arith.addf %cst_15, %66 : f32
    %cst_16 = arith.constant 5.000000e-01 : f32
    %68 = arith.mulf %65, %cst_16 : f32
    %cst_17 = arith.constant 4.864000e+02 : f32
    %69 = arith.subf %cst_17, %68 : f32
    %cst_18 = arith.constant 5.000000e-01 : f32
    %70 = arith.mulf %65, %cst_18 : f32
    %cst_19 = arith.constant 1.920000e+01 : f32
    %71 = arith.addf %cst_19, %70 : f32
    %cst_20 = arith.constant 5.000000e-01 : f32
    %72 = arith.mulf %65, %cst_20 : f32
    %cst_21 = arith.constant 3.648000e+02 : f32
    %73 = arith.subf %cst_21, %72 : f32
    %c0_22 = arith.constant 0 : index
    %74 = memref.load %arg1[%c0_22] : memref<10xf32, #tpu.memory_space<smem>>
    %cst_23 = arith.constant 1.000000e+00 : f32
    %75 = arith.cmpf ole, %74, %cst_23 : f32
    %76 = vector.extract_strided_slice %37 {offsets = [0, 0], sizes = [2, 1], strides = [1, 1]} : vector<2x10xf32> to vector<2x1xf32>
    %77 = vector.extract_strided_slice %39 {offsets = [0, 0], sizes = [2, 1], strides = [1, 1]} : vector<2x10xf32> to vector<2x1xf32>
    %78 = math.absf %76 : vector<2x1xf32>
    %79 = math.absf %77 : vector<2x1xf32>
    %80 = vector.broadcast %67 : f32 to vector<2x1xf32>
    %81 = arith.cmpf olt, %61, %80 : vector<2x1xf32>
    %cst_24 = arith.constant 0.000000e+00 : f32
    %82 = vector.broadcast %cst_24 : f32 to vector<2x1xf32>
    %83 = arith.select %81, %78, %82 : vector<2x1xi1>, vector<2x1xf32>
    %84 = vector.broadcast %69 : f32 to vector<2x1xf32>
    %85 = arith.cmpf ogt, %61, %84 : vector<2x1xf32>
    %cst_25 = arith.constant 0.000000e+00 : f32
    %86 = vector.broadcast %cst_25 : f32 to vector<2x1xf32>
    %87 = arith.select %85, %78, %86 : vector<2x1xi1>, vector<2x1xf32>
    %88 = arith.subf %83, %87 : vector<2x1xf32>
    %89 = vector.broadcast %67 : f32 to vector<2x1xf32>
    %90 = arith.cmpf ogt, %61, %89 : vector<2x1xf32>
    %91 = vector.broadcast %69 : f32 to vector<2x1xf32>
    %92 = arith.cmpf olt, %61, %91 : vector<2x1xf32>
    %93 = arith.andi %90, %92 : vector<2x1xi1>
    %cst_26 = arith.constant 0.000000e+00 : f32
    %94 = vector.broadcast %cst_26 : f32 to vector<2x1xf32>
    %95 = arith.select %93, %76, %94 : vector<2x1xi1>, vector<2x1xf32>
    %96 = arith.addf %88, %95 : vector<2x1xf32>
    %97 = vector.broadcast %71 : f32 to vector<2x1xf32>
    %98 = arith.cmpf olt, %63, %97 : vector<2x1xf32>
    %cst_27 = arith.constant 0.000000e+00 : f32
    %99 = vector.broadcast %cst_27 : f32 to vector<2x1xf32>
    %100 = arith.select %98, %79, %99 : vector<2x1xi1>, vector<2x1xf32>
    %101 = vector.broadcast %73 : f32 to vector<2x1xf32>
    %102 = arith.cmpf ogt, %63, %101 : vector<2x1xf32>
    %cst_28 = arith.constant 0.000000e+00 : f32
    %103 = vector.broadcast %cst_28 : f32 to vector<2x1xf32>
    %104 = arith.select %102, %79, %103 : vector<2x1xi1>, vector<2x1xf32>
    %105 = arith.subf %100, %104 : vector<2x1xf32>
    %106 = vector.broadcast %71 : f32 to vector<2x1xf32>
    %107 = arith.cmpf ogt, %63, %106 : vector<2x1xf32>
    %108 = vector.broadcast %73 : f32 to vector<2x1xf32>
    %109 = arith.cmpf olt, %63, %108 : vector<2x1xf32>
    %110 = arith.andi %107, %109 : vector<2x1xi1>
    %cst_29 = arith.constant 0.000000e+00 : f32
    %111 = vector.broadcast %cst_29 : f32 to vector<2x1xf32>
    %112 = arith.select %110, %77, %111 : vector<2x1xi1>, vector<2x1xf32>
    %113 = arith.addf %105, %112 : vector<2x1xf32>
    %114 = arith.addf %61, %96 : vector<2x1xf32>
    %115 = vector.extract_strided_slice %30 {offsets = [0, 0], sizes = [2, 1], strides = [1, 1]} : vector<2x10xf32> to vector<2x1xf32>
    %116 = arith.select %75, %114, %115 : vector<2x1xf32>
    %117 = arith.addf %63, %113 : vector<2x1xf32>
    %118 = vector.extract_strided_slice %35 {offsets = [0, 0], sizes = [2, 1], strides = [1, 1]} : vector<2x10xf32> to vector<2x1xf32>
    %119 = arith.select %75, %117, %118 : vector<2x1xf32>
    %c5_30 = arith.constant 5 : index
    %c1_31 = arith.constant 1 : index
    %120 = memref.load %arg0[%c5_30, %c1_31] : memref<6x10xf32, #tpu.memory_space<smem>>
    %cst_32 = arith.constant 1.000000e+00 : f32
    %121 = arith.mulf %cst_32, %120 : f32
    %cst_33 = arith.constant 5.000000e-01 : f32
    %122 = arith.mulf %121, %cst_33 : f32
    %cst_34 = arith.constant 2.560000e+01 : f32
    %123 = arith.addf %cst_34, %122 : f32
    %cst_35 = arith.constant 5.000000e-01 : f32
    %124 = arith.mulf %121, %cst_35 : f32
    %cst_36 = arith.constant 4.864000e+02 : f32
    %125 = arith.subf %cst_36, %124 : f32
    %cst_37 = arith.constant 5.000000e-01 : f32
    %126 = arith.mulf %121, %cst_37 : f32
    %cst_38 = arith.constant 1.920000e+01 : f32
    %127 = arith.addf %cst_38, %126 : f32
    %cst_39 = arith.constant 5.000000e-01 : f32
    %128 = arith.mulf %121, %cst_39 : f32
    %cst_40 = arith.constant 3.648000e+02 : f32
    %129 = arith.subf %cst_40, %128 : f32
    %c1_41 = arith.constant 1 : index
    %130 = memref.load %arg1[%c1_41] : memref<10xf32, #tpu.memory_space<smem>>
    %cst_42 = arith.constant 1.000000e+00 : f32
    %131 = arith.cmpf ole, %130, %cst_42 : f32
    %132 = vector.extract_strided_slice %37 {offsets = [0, 1], sizes = [2, 1], strides = [1, 1]} : vector<2x10xf32> to vector<2x1xf32>
    %133 = vector.extract_strided_slice %39 {offsets = [0, 1], sizes = [2, 1], strides = [1, 1]} : vector<2x10xf32> to vector<2x1xf32>
    %134 = math.absf %132 : vector<2x1xf32>
    %135 = math.absf %133 : vector<2x1xf32>
    %136 = vector.broadcast %123 : f32 to vector<2x1xf32>
    %137 = arith.cmpf olt, %116, %136 : vector<2x1xf32>
    %cst_43 = arith.constant 0.000000e+00 : f32
    %138 = vector.broadcast %cst_43 : f32 to vector<2x1xf32>
    %139 = arith.select %137, %134, %138 : vector<2x1xi1>, vector<2x1xf32>
    %140 = vector.broadcast %125 : f32 to vector<2x1xf32>
    %141 = arith.cmpf ogt, %116, %140 : vector<2x1xf32>
    %cst_44 = arith.constant 0.000000e+00 : f32
    %142 = vector.broadcast %cst_44 : f32 to vector<2x1xf32>
    %143 = arith.select %141, %134, %142 : vector<2x1xi1>, vector<2x1xf32>
    %144 = arith.subf %139, %143 : vector<2x1xf32>
    %145 = vector.broadcast %123 : f32 to vector<2x1xf32>
    %146 = arith.cmpf ogt, %116, %145 : vector<2x1xf32>
    %147 = vector.broadcast %125 : f32 to vector<2x1xf32>
    %148 = arith.cmpf olt, %116, %147 : vector<2x1xf32>
    %149 = arith.andi %146, %148 : vector<2x1xi1>
    %cst_45 = arith.constant 0.000000e+00 : f32
    %150 = vector.broadcast %cst_45 : f32 to vector<2x1xf32>
    %151 = arith.select %149, %132, %150 : vector<2x1xi1>, vector<2x1xf32>
    %152 = arith.addf %144, %151 : vector<2x1xf32>
    %153 = vector.broadcast %127 : f32 to vector<2x1xf32>
    %154 = arith.cmpf olt, %119, %153 : vector<2x1xf32>
    %cst_46 = arith.constant 0.000000e+00 : f32
    %155 = vector.broadcast %cst_46 : f32 to vector<2x1xf32>
    %156 = arith.select %154, %135, %155 : vector<2x1xi1>, vector<2x1xf32>
    %157 = vector.broadcast %129 : f32 to vector<2x1xf32>
    %158 = arith.cmpf ogt, %119, %157 : vector<2x1xf32>
    %cst_47 = arith.constant 0.000000e+00 : f32
    %159 = vector.broadcast %cst_47 : f32 to vector<2x1xf32>
    %160 = arith.select %158, %135, %159 : vector<2x1xi1>, vector<2x1xf32>
    %161 = arith.subf %156, %160 : vector<2x1xf32>
    %162 = vector.broadcast %127 : f32 to vector<2x1xf32>
    %163 = arith.cmpf ogt, %119, %162 : vector<2x1xf32>
    %164 = vector.broadcast %129 : f32 to vector<2x1xf32>
    %165 = arith.cmpf olt, %119, %164 : vector<2x1xf32>
    %166 = arith.andi %163, %165 : vector<2x1xi1>
    %cst_48 = arith.constant 0.000000e+00 : f32
    %167 = vector.broadcast %cst_48 : f32 to vector<2x1xf32>
    %168 = arith.select %166, %133, %167 : vector<2x1xi1>, vector<2x1xf32>
    %169 = arith.addf %161, %168 : vector<2x1xf32>
    %170 = arith.addf %116, %152 : vector<2x1xf32>
    %171 = vector.extract_strided_slice %30 {offsets = [0, 1], sizes = [2, 1], strides = [1, 1]} : vector<2x10xf32> to vector<2x1xf32>
    %172 = arith.select %131, %170, %171 : vector<2x1xf32>
    %173 = arith.addf %119, %169 : vector<2x1xf32>
    %174 = vector.extract_strided_slice %35 {offsets = [0, 1], sizes = [2, 1], strides = [1, 1]} : vector<2x10xf32> to vector<2x1xf32>
    %175 = arith.select %131, %173, %174 : vector<2x1xf32>
    %c5_49 = arith.constant 5 : index
    %c2 = arith.constant 2 : index
    %176 = memref.load %arg0[%c5_49, %c2] : memref<6x10xf32, #tpu.memory_space<smem>>
    %cst_50 = arith.constant 1.000000e+00 : f32
    %177 = arith.mulf %cst_50, %176 : f32
    %cst_51 = arith.constant 5.000000e-01 : f32
    %178 = arith.mulf %177, %cst_51 : f32
    %cst_52 = arith.constant 2.560000e+01 : f32
    %179 = arith.addf %cst_52, %178 : f32
    %cst_53 = arith.constant 5.000000e-01 : f32
    %180 = arith.mulf %177, %cst_53 : f32
    %cst_54 = arith.constant 4.864000e+02 : f32
    %181 = arith.subf %cst_54, %180 : f32
    %cst_55 = arith.constant 5.000000e-01 : f32
    %182 = arith.mulf %177, %cst_55 : f32
    %cst_56 = arith.constant 1.920000e+01 : f32
    %183 = arith.addf %cst_56, %182 : f32
    %cst_57 = arith.constant 5.000000e-01 : f32
    %184 = arith.mulf %177, %cst_57 : f32
    %cst_58 = arith.constant 3.648000e+02 : f32
    %185 = arith.subf %cst_58, %184 : f32
    %c2_59 = arith.constant 2 : index
    %186 = memref.load %arg1[%c2_59] : memref<10xf32, #tpu.memory_space<smem>>
    %cst_60 = arith.constant 1.000000e+00 : f32
    %187 = arith.cmpf ole, %186, %cst_60 : f32
    %188 = vector.extract_strided_slice %37 {offsets = [0, 2], sizes = [2, 1], strides = [1, 1]} : vector<2x10xf32> to vector<2x1xf32>
    %189 = vector.extract_strided_slice %39 {offsets = [0, 2], sizes = [2, 1], strides = [1, 1]} : vector<2x10xf32> to vector<2x1xf32>
    %190 = math.absf %188 : vector<2x1xf32>
    %191 = math.absf %189 : vector<2x1xf32>
    %192 = vector.broadcast %179 : f32 to vector<2x1xf32>
    %193 = arith.cmpf olt, %172, %192 : vector<2x1xf32>
    %cst_61 = arith.constant 0.000000e+00 : f32
    %194 = vector.broadcast %cst_61 : f32 to vector<2x1xf32>
    %195 = arith.select %193, %190, %194 : vector<2x1xi1>, vector<2x1xf32>
    %196 = vector.broadcast %181 : f32 to vector<2x1xf32>
    %197 = arith.cmpf ogt, %172, %196 : vector<2x1xf32>
    %cst_62 = arith.constant 0.000000e+00 : f32
    %198 = vector.broadcast %cst_62 : f32 to vector<2x1xf32>
    %199 = arith.select %197, %190, %198 : vector<2x1xi1>, vector<2x1xf32>
    %200 = arith.subf %195, %199 : vector<2x1xf32>
    %201 = vector.broadcast %179 : f32 to vector<2x1xf32>
    %202 = arith.cmpf ogt, %172, %201 : vector<2x1xf32>
    %203 = vector.broadcast %181 : f32 to vector<2x1xf32>
    %204 = arith.cmpf olt, %172, %203 : vector<2x1xf32>
    %205 = arith.andi %202, %204 : vector<2x1xi1>
    %cst_63 = arith.constant 0.000000e+00 : f32
    %206 = vector.broadcast %cst_63 : f32 to vector<2x1xf32>
    %207 = arith.select %205, %188, %206 : vector<2x1xi1>, vector<2x1xf32>
    %208 = arith.addf %200, %207 : vector<2x1xf32>
    %209 = vector.broadcast %183 : f32 to vector<2x1xf32>
    %210 = arith.cmpf olt, %175, %209 : vector<2x1xf32>
    %cst_64 = arith.constant 0.000000e+00 : f32
    %211 = vector.broadcast %cst_64 : f32 to vector<2x1xf32>
    %212 = arith.select %210, %191, %211 : vector<2x1xi1>, vector<2x1xf32>
    %213 = vector.broadcast %185 : f32 to vector<2x1xf32>
    %214 = arith.cmpf ogt, %175, %213 : vector<2x1xf32>
    %cst_65 = arith.constant 0.000000e+00 : f32
    %215 = vector.broadcast %cst_65 : f32 to vector<2x1xf32>
    %216 = arith.select %214, %191, %215 : vector<2x1xi1>, vector<2x1xf32>
    %217 = arith.subf %212, %216 : vector<2x1xf32>
    %218 = vector.broadcast %183 : f32 to vector<2x1xf32>
    %219 = arith.cmpf ogt, %175, %218 : vector<2x1xf32>
    %220 = vector.broadcast %185 : f32 to vector<2x1xf32>
    %221 = arith.cmpf olt, %175, %220 : vector<2x1xf32>
    %222 = arith.andi %219, %221 : vector<2x1xi1>
    %cst_66 = arith.constant 0.000000e+00 : f32
    %223 = vector.broadcast %cst_66 : f32 to vector<2x1xf32>
    %224 = arith.select %222, %189, %223 : vector<2x1xi1>, vector<2x1xf32>
    %225 = arith.addf %217, %224 : vector<2x1xf32>
    %226 = arith.addf %172, %208 : vector<2x1xf32>
    %227 = vector.extract_strided_slice %30 {offsets = [0, 2], sizes = [2, 1], strides = [1, 1]} : vector<2x10xf32> to vector<2x1xf32>
    %228 = arith.select %187, %226, %227 : vector<2x1xf32>
    %229 = arith.addf %175, %225 : vector<2x1xf32>
    %230 = vector.extract_strided_slice %35 {offsets = [0, 2], sizes = [2, 1], strides = [1, 1]} : vector<2x10xf32> to vector<2x1xf32>
    %231 = arith.select %187, %229, %230 : vector<2x1xf32>
    %c5_67 = arith.constant 5 : index
    %c3 = arith.constant 3 : index
    %232 = memref.load %arg0[%c5_67, %c3] : memref<6x10xf32, #tpu.memory_space<smem>>
    %cst_68 = arith.constant 1.000000e+00 : f32
    %233 = arith.mulf %cst_68, %232 : f32
    %cst_69 = arith.constant 5.000000e-01 : f32
    %234 = arith.mulf %233, %cst_69 : f32
    %cst_70 = arith.constant 2.560000e+01 : f32
    %235 = arith.addf %cst_70, %234 : f32
    %cst_71 = arith.constant 5.000000e-01 : f32
    %236 = arith.mulf %233, %cst_71 : f32
    %cst_72 = arith.constant 4.864000e+02 : f32
    %237 = arith.subf %cst_72, %236 : f32
    %cst_73 = arith.constant 5.000000e-01 : f32
    %238 = arith.mulf %233, %cst_73 : f32
    %cst_74 = arith.constant 1.920000e+01 : f32
    %239 = arith.addf %cst_74, %238 : f32
    %cst_75 = arith.constant 5.000000e-01 : f32
    %240 = arith.mulf %233, %cst_75 : f32
    %cst_76 = arith.constant 3.648000e+02 : f32
    %241 = arith.subf %cst_76, %240 : f32
    %c3_77 = arith.constant 3 : index
    %242 = memref.load %arg1[%c3_77] : memref<10xf32, #tpu.memory_space<smem>>
    %cst_78 = arith.constant 1.000000e+00 : f32
    %243 = arith.cmpf ole, %242, %cst_78 : f32
    %244 = vector.extract_strided_slice %37 {offsets = [0, 3], sizes = [2, 1], strides = [1, 1]} : vector<2x10xf32> to vector<2x1xf32>
    %245 = vector.extract_strided_slice %39 {offsets = [0, 3], sizes = [2, 1], strides = [1, 1]} : vector<2x10xf32> to vector<2x1xf32>
    %246 = math.absf %244 : vector<2x1xf32>
    %247 = math.absf %245 : vector<2x1xf32>
    %248 = vector.broadcast %235 : f32 to vector<2x1xf32>
    %249 = arith.cmpf olt, %228, %248 : vector<2x1xf32>
    %cst_79 = arith.constant 0.000000e+00 : f32
    %250 = vector.broadcast %cst_79 : f32 to vector<2x1xf32>
    %251 = arith.select %249, %246, %250 : vector<2x1xi1>, vector<2x1xf32>
    %252 = vector.broadcast %237 : f32 to vector<2x1xf32>
    %253 = arith.cmpf ogt, %228, %252 : vector<2x1xf32>
    %cst_80 = arith.constant 0.000000e+00 : f32
    %254 = vector.broadcast %cst_80 : f32 to vector<2x1xf32>
    %255 = arith.select %253, %246, %254 : vector<2x1xi1>, vector<2x1xf32>
    %256 = arith.subf %251, %255 : vector<2x1xf32>
    %257 = vector.broadcast %235 : f32 to vector<2x1xf32>
    %258 = arith.cmpf ogt, %228, %257 : vector<2x1xf32>
    %259 = vector.broadcast %237 : f32 to vector<2x1xf32>
    %260 = arith.cmpf olt, %228, %259 : vector<2x1xf32>
    %261 = arith.andi %258, %260 : vector<2x1xi1>
    %cst_81 = arith.constant 0.000000e+00 : f32
    %262 = vector.broadcast %cst_81 : f32 to vector<2x1xf32>
    %263 = arith.select %261, %244, %262 : vector<2x1xi1>, vector<2x1xf32>
    %264 = arith.addf %256, %263 : vector<2x1xf32>
    %265 = vector.broadcast %239 : f32 to vector<2x1xf32>
    %266 = arith.cmpf olt, %231, %265 : vector<2x1xf32>
    %cst_82 = arith.constant 0.000000e+00 : f32
    %267 = vector.broadcast %cst_82 : f32 to vector<2x1xf32>
    %268 = arith.select %266, %247, %267 : vector<2x1xi1>, vector<2x1xf32>
    %269 = vector.broadcast %241 : f32 to vector<2x1xf32>
    %270 = arith.cmpf ogt, %231, %269 : vector<2x1xf32>
    %cst_83 = arith.constant 0.000000e+00 : f32
    %271 = vector.broadcast %cst_83 : f32 to vector<2x1xf32>
    %272 = arith.select %270, %247, %271 : vector<2x1xi1>, vector<2x1xf32>
    %273 = arith.subf %268, %272 : vector<2x1xf32>
    %274 = vector.broadcast %239 : f32 to vector<2x1xf32>
    %275 = arith.cmpf ogt, %231, %274 : vector<2x1xf32>
    %276 = vector.broadcast %241 : f32 to vector<2x1xf32>
    %277 = arith.cmpf olt, %231, %276 : vector<2x1xf32>
    %278 = arith.andi %275, %277 : vector<2x1xi1>
    %cst_84 = arith.constant 0.000000e+00 : f32
    %279 = vector.broadcast %cst_84 : f32 to vector<2x1xf32>
    %280 = arith.select %278, %245, %279 : vector<2x1xi1>, vector<2x1xf32>
    %281 = arith.addf %273, %280 : vector<2x1xf32>
    %282 = arith.addf %228, %264 : vector<2x1xf32>
    %283 = vector.extract_strided_slice %30 {offsets = [0, 3], sizes = [2, 1], strides = [1, 1]} : vector<2x10xf32> to vector<2x1xf32>
    %284 = arith.select %243, %282, %283 : vector<2x1xf32>
    %285 = arith.addf %231, %281 : vector<2x1xf32>
    %286 = vector.extract_strided_slice %35 {offsets = [0, 3], sizes = [2, 1], strides = [1, 1]} : vector<2x10xf32> to vector<2x1xf32>
    %287 = arith.select %243, %285, %286 : vector<2x1xf32>
    %c5_85 = arith.constant 5 : index
    %c4 = arith.constant 4 : index
    %288 = memref.load %arg0[%c5_85, %c4] : memref<6x10xf32, #tpu.memory_space<smem>>
    %cst_86 = arith.constant 1.000000e+00 : f32
    %289 = arith.mulf %cst_86, %288 : f32
    %cst_87 = arith.constant 5.000000e-01 : f32
    %290 = arith.mulf %289, %cst_87 : f32
    %cst_88 = arith.constant 2.560000e+01 : f32
    %291 = arith.addf %cst_88, %290 : f32
    %cst_89 = arith.constant 5.000000e-01 : f32
    %292 = arith.mulf %289, %cst_89 : f32
    %cst_90 = arith.constant 4.864000e+02 : f32
    %293 = arith.subf %cst_90, %292 : f32
    %cst_91 = arith.constant 5.000000e-01 : f32
    %294 = arith.mulf %289, %cst_91 : f32
    %cst_92 = arith.constant 1.920000e+01 : f32
    %295 = arith.addf %cst_92, %294 : f32
    %cst_93 = arith.constant 5.000000e-01 : f32
    %296 = arith.mulf %289, %cst_93 : f32
    %cst_94 = arith.constant 3.648000e+02 : f32
    %297 = arith.subf %cst_94, %296 : f32
    %c4_95 = arith.constant 4 : index
    %298 = memref.load %arg1[%c4_95] : memref<10xf32, #tpu.memory_space<smem>>
    %cst_96 = arith.constant 1.000000e+00 : f32
    %299 = arith.cmpf ole, %298, %cst_96 : f32
    %300 = vector.extract_strided_slice %37 {offsets = [0, 4], sizes = [2, 1], strides = [1, 1]} : vector<2x10xf32> to vector<2x1xf32>
    %301 = vector.extract_strided_slice %39 {offsets = [0, 4], sizes = [2, 1], strides = [1, 1]} : vector<2x10xf32> to vector<2x1xf32>
    %302 = math.absf %300 : vector<2x1xf32>
    %303 = math.absf %301 : vector<2x1xf32>
    %304 = vector.broadcast %291 : f32 to vector<2x1xf32>
    %305 = arith.cmpf olt, %284, %304 : vector<2x1xf32>
    %cst_97 = arith.constant 0.000000e+00 : f32
    %306 = vector.broadcast %cst_97 : f32 to vector<2x1xf32>
    %307 = arith.select %305, %302, %306 : vector<2x1xi1>, vector<2x1xf32>
    %308 = vector.broadcast %293 : f32 to vector<2x1xf32>
    %309 = arith.cmpf ogt, %284, %308 : vector<2x1xf32>
    %cst_98 = arith.constant 0.000000e+00 : f32
    %310 = vector.broadcast %cst_98 : f32 to vector<2x1xf32>
    %311 = arith.select %309, %302, %310 : vector<2x1xi1>, vector<2x1xf32>
    %312 = arith.subf %307, %311 : vector<2x1xf32>
    %313 = vector.broadcast %291 : f32 to vector<2x1xf32>
    %314 = arith.cmpf ogt, %284, %313 : vector<2x1xf32>
    %315 = vector.broadcast %293 : f32 to vector<2x1xf32>
    %316 = arith.cmpf olt, %284, %315 : vector<2x1xf32>
    %317 = arith.andi %314, %316 : vector<2x1xi1>
    %cst_99 = arith.constant 0.000000e+00 : f32
    %318 = vector.broadcast %cst_99 : f32 to vector<2x1xf32>
    %319 = arith.select %317, %300, %318 : vector<2x1xi1>, vector<2x1xf32>
    %320 = arith.addf %312, %319 : vector<2x1xf32>
    %321 = vector.broadcast %295 : f32 to vector<2x1xf32>
    %322 = arith.cmpf olt, %287, %321 : vector<2x1xf32>
    %cst_100 = arith.constant 0.000000e+00 : f32
    %323 = vector.broadcast %cst_100 : f32 to vector<2x1xf32>
    %324 = arith.select %322, %303, %323 : vector<2x1xi1>, vector<2x1xf32>
    %325 = vector.broadcast %297 : f32 to vector<2x1xf32>
    %326 = arith.cmpf ogt, %287, %325 : vector<2x1xf32>
    %cst_101 = arith.constant 0.000000e+00 : f32
    %327 = vector.broadcast %cst_101 : f32 to vector<2x1xf32>
    %328 = arith.select %326, %303, %327 : vector<2x1xi1>, vector<2x1xf32>
    %329 = arith.subf %324, %328 : vector<2x1xf32>
    %330 = vector.broadcast %295 : f32 to vector<2x1xf32>
    %331 = arith.cmpf ogt, %287, %330 : vector<2x1xf32>
    %332 = vector.broadcast %297 : f32 to vector<2x1xf32>
    %333 = arith.cmpf olt, %287, %332 : vector<2x1xf32>
    %334 = arith.andi %331, %333 : vector<2x1xi1>
    %cst_102 = arith.constant 0.000000e+00 : f32
    %335 = vector.broadcast %cst_102 : f32 to vector<2x1xf32>
    %336 = arith.select %334, %301, %335 : vector<2x1xi1>, vector<2x1xf32>
    %337 = arith.addf %329, %336 : vector<2x1xf32>
    %338 = arith.addf %284, %320 : vector<2x1xf32>
    %339 = vector.extract_strided_slice %30 {offsets = [0, 4], sizes = [2, 1], strides = [1, 1]} : vector<2x10xf32> to vector<2x1xf32>
    %340 = arith.select %299, %338, %339 : vector<2x1xf32>
    %341 = arith.addf %287, %337 : vector<2x1xf32>
    %342 = vector.extract_strided_slice %35 {offsets = [0, 4], sizes = [2, 1], strides = [1, 1]} : vector<2x10xf32> to vector<2x1xf32>
    %343 = arith.select %299, %341, %342 : vector<2x1xf32>
    %c5_103 = arith.constant 5 : index
    %c5_104 = arith.constant 5 : index
    %344 = memref.load %arg0[%c5_103, %c5_104] : memref<6x10xf32, #tpu.memory_space<smem>>
    %cst_105 = arith.constant 1.000000e+00 : f32
    %345 = arith.mulf %cst_105, %344 : f32
    %cst_106 = arith.constant 5.000000e-01 : f32
    %346 = arith.mulf %345, %cst_106 : f32
    %cst_107 = arith.constant 2.560000e+01 : f32
    %347 = arith.addf %cst_107, %346 : f32
    %cst_108 = arith.constant 5.000000e-01 : f32
    %348 = arith.mulf %345, %cst_108 : f32
    %cst_109 = arith.constant 4.864000e+02 : f32
    %349 = arith.subf %cst_109, %348 : f32
    %cst_110 = arith.constant 5.000000e-01 : f32
    %350 = arith.mulf %345, %cst_110 : f32
    %cst_111 = arith.constant 1.920000e+01 : f32
    %351 = arith.addf %cst_111, %350 : f32
    %cst_112 = arith.constant 5.000000e-01 : f32
    %352 = arith.mulf %345, %cst_112 : f32
    %cst_113 = arith.constant 3.648000e+02 : f32
    %353 = arith.subf %cst_113, %352 : f32
    %c5_114 = arith.constant 5 : index
    %354 = memref.load %arg1[%c5_114] : memref<10xf32, #tpu.memory_space<smem>>
    %cst_115 = arith.constant 1.000000e+00 : f32
    %355 = arith.cmpf ole, %354, %cst_115 : f32
    %356 = vector.extract_strided_slice %37 {offsets = [0, 5], sizes = [2, 1], strides = [1, 1]} : vector<2x10xf32> to vector<2x1xf32>
    %357 = vector.extract_strided_slice %39 {offsets = [0, 5], sizes = [2, 1], strides = [1, 1]} : vector<2x10xf32> to vector<2x1xf32>
    %358 = math.absf %356 : vector<2x1xf32>
    %359 = math.absf %357 : vector<2x1xf32>
    %360 = vector.broadcast %347 : f32 to vector<2x1xf32>
    %361 = arith.cmpf olt, %340, %360 : vector<2x1xf32>
    %cst_116 = arith.constant 0.000000e+00 : f32
    %362 = vector.broadcast %cst_116 : f32 to vector<2x1xf32>
    %363 = arith.select %361, %358, %362 : vector<2x1xi1>, vector<2x1xf32>
    %364 = vector.broadcast %349 : f32 to vector<2x1xf32>
    %365 = arith.cmpf ogt, %340, %364 : vector<2x1xf32>
    %cst_117 = arith.constant 0.000000e+00 : f32
    %366 = vector.broadcast %cst_117 : f32 to vector<2x1xf32>
    %367 = arith.select %365, %358, %366 : vector<2x1xi1>, vector<2x1xf32>
    %368 = arith.subf %363, %367 : vector<2x1xf32>
    %369 = vector.broadcast %347 : f32 to vector<2x1xf32>
    %370 = arith.cmpf ogt, %340, %369 : vector<2x1xf32>
    %371 = vector.broadcast %349 : f32 to vector<2x1xf32>
    %372 = arith.cmpf olt, %340, %371 : vector<2x1xf32>
    %373 = arith.andi %370, %372 : vector<2x1xi1>
    %cst_118 = arith.constant 0.000000e+00 : f32
    %374 = vector.broadcast %cst_118 : f32 to vector<2x1xf32>
    %375 = arith.select %373, %356, %374 : vector<2x1xi1>, vector<2x1xf32>
    %376 = arith.addf %368, %375 : vector<2x1xf32>
    %377 = vector.broadcast %351 : f32 to vector<2x1xf32>
    %378 = arith.cmpf olt, %343, %377 : vector<2x1xf32>
    %cst_119 = arith.constant 0.000000e+00 : f32
    %379 = vector.broadcast %cst_119 : f32 to vector<2x1xf32>
    %380 = arith.select %378, %359, %379 : vector<2x1xi1>, vector<2x1xf32>
    %381 = vector.broadcast %353 : f32 to vector<2x1xf32>
    %382 = arith.cmpf ogt, %343, %381 : vector<2x1xf32>
    %cst_120 = arith.constant 0.000000e+00 : f32
    %383 = vector.broadcast %cst_120 : f32 to vector<2x1xf32>
    %384 = arith.select %382, %359, %383 : vector<2x1xi1>, vector<2x1xf32>
    %385 = arith.subf %380, %384 : vector<2x1xf32>
    %386 = vector.broadcast %351 : f32 to vector<2x1xf32>
    %387 = arith.cmpf ogt, %343, %386 : vector<2x1xf32>
    %388 = vector.broadcast %353 : f32 to vector<2x1xf32>
    %389 = arith.cmpf olt, %343, %388 : vector<2x1xf32>
    %390 = arith.andi %387, %389 : vector<2x1xi1>
    %cst_121 = arith.constant 0.000000e+00 : f32
    %391 = vector.broadcast %cst_121 : f32 to vector<2x1xf32>
    %392 = arith.select %390, %357, %391 : vector<2x1xi1>, vector<2x1xf32>
    %393 = arith.addf %385, %392 : vector<2x1xf32>
    %394 = arith.addf %340, %376 : vector<2x1xf32>
    %395 = vector.extract_strided_slice %30 {offsets = [0, 5], sizes = [2, 1], strides = [1, 1]} : vector<2x10xf32> to vector<2x1xf32>
    %396 = arith.select %355, %394, %395 : vector<2x1xf32>
    %397 = arith.addf %343, %393 : vector<2x1xf32>
    %398 = vector.extract_strided_slice %35 {offsets = [0, 5], sizes = [2, 1], strides = [1, 1]} : vector<2x10xf32> to vector<2x1xf32>
    %399 = arith.select %355, %397, %398 : vector<2x1xf32>
    %c5_122 = arith.constant 5 : index
    %c6 = arith.constant 6 : index
    %400 = memref.load %arg0[%c5_122, %c6] : memref<6x10xf32, #tpu.memory_space<smem>>
    %cst_123 = arith.constant 1.000000e+00 : f32
    %401 = arith.mulf %cst_123, %400 : f32
    %cst_124 = arith.constant 5.000000e-01 : f32
    %402 = arith.mulf %401, %cst_124 : f32
    %cst_125 = arith.constant 2.560000e+01 : f32
    %403 = arith.addf %cst_125, %402 : f32
    %cst_126 = arith.constant 5.000000e-01 : f32
    %404 = arith.mulf %401, %cst_126 : f32
    %cst_127 = arith.constant 4.864000e+02 : f32
    %405 = arith.subf %cst_127, %404 : f32
    %cst_128 = arith.constant 5.000000e-01 : f32
    %406 = arith.mulf %401, %cst_128 : f32
    %cst_129 = arith.constant 1.920000e+01 : f32
    %407 = arith.addf %cst_129, %406 : f32
    %cst_130 = arith.constant 5.000000e-01 : f32
    %408 = arith.mulf %401, %cst_130 : f32
    %cst_131 = arith.constant 3.648000e+02 : f32
    %409 = arith.subf %cst_131, %408 : f32
    %c6_132 = arith.constant 6 : index
    %410 = memref.load %arg1[%c6_132] : memref<10xf32, #tpu.memory_space<smem>>
    %cst_133 = arith.constant 1.000000e+00 : f32
    %411 = arith.cmpf ole, %410, %cst_133 : f32
    %412 = vector.extract_strided_slice %37 {offsets = [0, 6], sizes = [2, 1], strides = [1, 1]} : vector<2x10xf32> to vector<2x1xf32>
    %413 = vector.extract_strided_slice %39 {offsets = [0, 6], sizes = [2, 1], strides = [1, 1]} : vector<2x10xf32> to vector<2x1xf32>
    %414 = math.absf %412 : vector<2x1xf32>
    %415 = math.absf %413 : vector<2x1xf32>
    %416 = vector.broadcast %403 : f32 to vector<2x1xf32>
    %417 = arith.cmpf olt, %396, %416 : vector<2x1xf32>
    %cst_134 = arith.constant 0.000000e+00 : f32
    %418 = vector.broadcast %cst_134 : f32 to vector<2x1xf32>
    %419 = arith.select %417, %414, %418 : vector<2x1xi1>, vector<2x1xf32>
    %420 = vector.broadcast %405 : f32 to vector<2x1xf32>
    %421 = arith.cmpf ogt, %396, %420 : vector<2x1xf32>
    %cst_135 = arith.constant 0.000000e+00 : f32
    %422 = vector.broadcast %cst_135 : f32 to vector<2x1xf32>
    %423 = arith.select %421, %414, %422 : vector<2x1xi1>, vector<2x1xf32>
    %424 = arith.subf %419, %423 : vector<2x1xf32>
    %425 = vector.broadcast %403 : f32 to vector<2x1xf32>
    %426 = arith.cmpf ogt, %396, %425 : vector<2x1xf32>
    %427 = vector.broadcast %405 : f32 to vector<2x1xf32>
    %428 = arith.cmpf olt, %396, %427 : vector<2x1xf32>
    %429 = arith.andi %426, %428 : vector<2x1xi1>
    %cst_136 = arith.constant 0.000000e+00 : f32
    %430 = vector.broadcast %cst_136 : f32 to vector<2x1xf32>
    %431 = arith.select %429, %412, %430 : vector<2x1xi1>, vector<2x1xf32>
    %432 = arith.addf %424, %431 : vector<2x1xf32>
    %433 = vector.broadcast %407 : f32 to vector<2x1xf32>
    %434 = arith.cmpf olt, %399, %433 : vector<2x1xf32>
    %cst_137 = arith.constant 0.000000e+00 : f32
    %435 = vector.broadcast %cst_137 : f32 to vector<2x1xf32>
    %436 = arith.select %434, %415, %435 : vector<2x1xi1>, vector<2x1xf32>
    %437 = vector.broadcast %409 : f32 to vector<2x1xf32>
    %438 = arith.cmpf ogt, %399, %437 : vector<2x1xf32>
    %cst_138 = arith.constant 0.000000e+00 : f32
    %439 = vector.broadcast %cst_138 : f32 to vector<2x1xf32>
    %440 = arith.select %438, %415, %439 : vector<2x1xi1>, vector<2x1xf32>
    %441 = arith.subf %436, %440 : vector<2x1xf32>
    %442 = vector.broadcast %407 : f32 to vector<2x1xf32>
    %443 = arith.cmpf ogt, %399, %442 : vector<2x1xf32>
    %444 = vector.broadcast %409 : f32 to vector<2x1xf32>
    %445 = arith.cmpf olt, %399, %444 : vector<2x1xf32>
    %446 = arith.andi %443, %445 : vector<2x1xi1>
    %cst_139 = arith.constant 0.000000e+00 : f32
    %447 = vector.broadcast %cst_139 : f32 to vector<2x1xf32>
    %448 = arith.select %446, %413, %447 : vector<2x1xi1>, vector<2x1xf32>
    %449 = arith.addf %441, %448 : vector<2x1xf32>
    %450 = arith.addf %396, %432 : vector<2x1xf32>
    %451 = vector.extract_strided_slice %30 {offsets = [0, 6], sizes = [2, 1], strides = [1, 1]} : vector<2x10xf32> to vector<2x1xf32>
    %452 = arith.select %411, %450, %451 : vector<2x1xf32>
    %453 = arith.addf %399, %449 : vector<2x1xf32>
    %454 = vector.extract_strided_slice %35 {offsets = [0, 6], sizes = [2, 1], strides = [1, 1]} : vector<2x10xf32> to vector<2x1xf32>
    %455 = arith.select %411, %453, %454 : vector<2x1xf32>
    %c5_140 = arith.constant 5 : index
    %c7 = arith.constant 7 : index
    %456 = memref.load %arg0[%c5_140, %c7] : memref<6x10xf32, #tpu.memory_space<smem>>
    %cst_141 = arith.constant 1.000000e+00 : f32
    %457 = arith.mulf %cst_141, %456 : f32
    %cst_142 = arith.constant 5.000000e-01 : f32
    %458 = arith.mulf %457, %cst_142 : f32
    %cst_143 = arith.constant 2.560000e+01 : f32
    %459 = arith.addf %cst_143, %458 : f32
    %cst_144 = arith.constant 5.000000e-01 : f32
    %460 = arith.mulf %457, %cst_144 : f32
    %cst_145 = arith.constant 4.864000e+02 : f32
    %461 = arith.subf %cst_145, %460 : f32
    %cst_146 = arith.constant 5.000000e-01 : f32
    %462 = arith.mulf %457, %cst_146 : f32
    %cst_147 = arith.constant 1.920000e+01 : f32
    %463 = arith.addf %cst_147, %462 : f32
    %cst_148 = arith.constant 5.000000e-01 : f32
    %464 = arith.mulf %457, %cst_148 : f32
    %cst_149 = arith.constant 3.648000e+02 : f32
    %465 = arith.subf %cst_149, %464 : f32
    %c7_150 = arith.constant 7 : index
    %466 = memref.load %arg1[%c7_150] : memref<10xf32, #tpu.memory_space<smem>>
    %cst_151 = arith.constant 1.000000e+00 : f32
    %467 = arith.cmpf ole, %466, %cst_151 : f32
    %468 = vector.extract_strided_slice %37 {offsets = [0, 7], sizes = [2, 1], strides = [1, 1]} : vector<2x10xf32> to vector<2x1xf32>
    %469 = vector.extract_strided_slice %39 {offsets = [0, 7], sizes = [2, 1], strides = [1, 1]} : vector<2x10xf32> to vector<2x1xf32>
    %470 = math.absf %468 : vector<2x1xf32>
    %471 = math.absf %469 : vector<2x1xf32>
    %472 = vector.broadcast %459 : f32 to vector<2x1xf32>
    %473 = arith.cmpf olt, %452, %472 : vector<2x1xf32>
    %cst_152 = arith.constant 0.000000e+00 : f32
    %474 = vector.broadcast %cst_152 : f32 to vector<2x1xf32>
    %475 = arith.select %473, %470, %474 : vector<2x1xi1>, vector<2x1xf32>
    %476 = vector.broadcast %461 : f32 to vector<2x1xf32>
    %477 = arith.cmpf ogt, %452, %476 : vector<2x1xf32>
    %cst_153 = arith.constant 0.000000e+00 : f32
    %478 = vector.broadcast %cst_153 : f32 to vector<2x1xf32>
    %479 = arith.select %477, %470, %478 : vector<2x1xi1>, vector<2x1xf32>
    %480 = arith.subf %475, %479 : vector<2x1xf32>
    %481 = vector.broadcast %459 : f32 to vector<2x1xf32>
    %482 = arith.cmpf ogt, %452, %481 : vector<2x1xf32>
    %483 = vector.broadcast %461 : f32 to vector<2x1xf32>
    %484 = arith.cmpf olt, %452, %483 : vector<2x1xf32>
    %485 = arith.andi %482, %484 : vector<2x1xi1>
    %cst_154 = arith.constant 0.000000e+00 : f32
    %486 = vector.broadcast %cst_154 : f32 to vector<2x1xf32>
    %487 = arith.select %485, %468, %486 : vector<2x1xi1>, vector<2x1xf32>
    %488 = arith.addf %480, %487 : vector<2x1xf32>
    %489 = vector.broadcast %463 : f32 to vector<2x1xf32>
    %490 = arith.cmpf olt, %455, %489 : vector<2x1xf32>
    %cst_155 = arith.constant 0.000000e+00 : f32
    %491 = vector.broadcast %cst_155 : f32 to vector<2x1xf32>
    %492 = arith.select %490, %471, %491 : vector<2x1xi1>, vector<2x1xf32>
    %493 = vector.broadcast %465 : f32 to vector<2x1xf32>
    %494 = arith.cmpf ogt, %455, %493 : vector<2x1xf32>
    %cst_156 = arith.constant 0.000000e+00 : f32
    %495 = vector.broadcast %cst_156 : f32 to vector<2x1xf32>
    %496 = arith.select %494, %471, %495 : vector<2x1xi1>, vector<2x1xf32>
    %497 = arith.subf %492, %496 : vector<2x1xf32>
    %498 = vector.broadcast %463 : f32 to vector<2x1xf32>
    %499 = arith.cmpf ogt, %455, %498 : vector<2x1xf32>
    %500 = vector.broadcast %465 : f32 to vector<2x1xf32>
    %501 = arith.cmpf olt, %455, %500 : vector<2x1xf32>
    %502 = arith.andi %499, %501 : vector<2x1xi1>
    %cst_157 = arith.constant 0.000000e+00 : f32
    %503 = vector.broadcast %cst_157 : f32 to vector<2x1xf32>
    %504 = arith.select %502, %469, %503 : vector<2x1xi1>, vector<2x1xf32>
    %505 = arith.addf %497, %504 : vector<2x1xf32>
    %506 = arith.addf %452, %488 : vector<2x1xf32>
    %507 = vector.extract_strided_slice %30 {offsets = [0, 7], sizes = [2, 1], strides = [1, 1]} : vector<2x10xf32> to vector<2x1xf32>
    %508 = arith.select %467, %506, %507 : vector<2x1xf32>
    %509 = arith.addf %455, %505 : vector<2x1xf32>
    %510 = vector.extract_strided_slice %35 {offsets = [0, 7], sizes = [2, 1], strides = [1, 1]} : vector<2x10xf32> to vector<2x1xf32>
    %511 = arith.select %467, %509, %510 : vector<2x1xf32>
    %c5_158 = arith.constant 5 : index
    %c8 = arith.constant 8 : index
    %512 = memref.load %arg0[%c5_158, %c8] : memref<6x10xf32, #tpu.memory_space<smem>>
    %cst_159 = arith.constant 1.000000e+00 : f32
    %513 = arith.mulf %cst_159, %512 : f32
    %cst_160 = arith.constant 5.000000e-01 : f32
    %514 = arith.mulf %513, %cst_160 : f32
    %cst_161 = arith.constant 2.560000e+01 : f32
    %515 = arith.addf %cst_161, %514 : f32
    %cst_162 = arith.constant 5.000000e-01 : f32
    %516 = arith.mulf %513, %cst_162 : f32
    %cst_163 = arith.constant 4.864000e+02 : f32
    %517 = arith.subf %cst_163, %516 : f32
    %cst_164 = arith.constant 5.000000e-01 : f32
    %518 = arith.mulf %513, %cst_164 : f32
    %cst_165 = arith.constant 1.920000e+01 : f32
    %519 = arith.addf %cst_165, %518 : f32
    %cst_166 = arith.constant 5.000000e-01 : f32
    %520 = arith.mulf %513, %cst_166 : f32
    %cst_167 = arith.constant 3.648000e+02 : f32
    %521 = arith.subf %cst_167, %520 : f32
    %c8_168 = arith.constant 8 : index
    %522 = memref.load %arg1[%c8_168] : memref<10xf32, #tpu.memory_space<smem>>
    %cst_169 = arith.constant 1.000000e+00 : f32
    %523 = arith.cmpf ole, %522, %cst_169 : f32
    %524 = vector.extract_strided_slice %37 {offsets = [0, 8], sizes = [2, 1], strides = [1, 1]} : vector<2x10xf32> to vector<2x1xf32>
    %525 = vector.extract_strided_slice %39 {offsets = [0, 8], sizes = [2, 1], strides = [1, 1]} : vector<2x10xf32> to vector<2x1xf32>
    %526 = math.absf %524 : vector<2x1xf32>
    %527 = math.absf %525 : vector<2x1xf32>
    %528 = vector.broadcast %515 : f32 to vector<2x1xf32>
    %529 = arith.cmpf olt, %508, %528 : vector<2x1xf32>
    %cst_170 = arith.constant 0.000000e+00 : f32
    %530 = vector.broadcast %cst_170 : f32 to vector<2x1xf32>
    %531 = arith.select %529, %526, %530 : vector<2x1xi1>, vector<2x1xf32>
    %532 = vector.broadcast %517 : f32 to vector<2x1xf32>
    %533 = arith.cmpf ogt, %508, %532 : vector<2x1xf32>
    %cst_171 = arith.constant 0.000000e+00 : f32
    %534 = vector.broadcast %cst_171 : f32 to vector<2x1xf32>
    %535 = arith.select %533, %526, %534 : vector<2x1xi1>, vector<2x1xf32>
    %536 = arith.subf %531, %535 : vector<2x1xf32>
    %537 = vector.broadcast %515 : f32 to vector<2x1xf32>
    %538 = arith.cmpf ogt, %508, %537 : vector<2x1xf32>
    %539 = vector.broadcast %517 : f32 to vector<2x1xf32>
    %540 = arith.cmpf olt, %508, %539 : vector<2x1xf32>
    %541 = arith.andi %538, %540 : vector<2x1xi1>
    %cst_172 = arith.constant 0.000000e+00 : f32
    %542 = vector.broadcast %cst_172 : f32 to vector<2x1xf32>
    %543 = arith.select %541, %524, %542 : vector<2x1xi1>, vector<2x1xf32>
    %544 = arith.addf %536, %543 : vector<2x1xf32>
    %545 = vector.broadcast %519 : f32 to vector<2x1xf32>
    %546 = arith.cmpf olt, %511, %545 : vector<2x1xf32>
    %cst_173 = arith.constant 0.000000e+00 : f32
    %547 = vector.broadcast %cst_173 : f32 to vector<2x1xf32>
    %548 = arith.select %546, %527, %547 : vector<2x1xi1>, vector<2x1xf32>
    %549 = vector.broadcast %521 : f32 to vector<2x1xf32>
    %550 = arith.cmpf ogt, %511, %549 : vector<2x1xf32>
    %cst_174 = arith.constant 0.000000e+00 : f32
    %551 = vector.broadcast %cst_174 : f32 to vector<2x1xf32>
    %552 = arith.select %550, %527, %551 : vector<2x1xi1>, vector<2x1xf32>
    %553 = arith.subf %548, %552 : vector<2x1xf32>
    %554 = vector.broadcast %519 : f32 to vector<2x1xf32>
    %555 = arith.cmpf ogt, %511, %554 : vector<2x1xf32>
    %556 = vector.broadcast %521 : f32 to vector<2x1xf32>
    %557 = arith.cmpf olt, %511, %556 : vector<2x1xf32>
    %558 = arith.andi %555, %557 : vector<2x1xi1>
    %cst_175 = arith.constant 0.000000e+00 : f32
    %559 = vector.broadcast %cst_175 : f32 to vector<2x1xf32>
    %560 = arith.select %558, %525, %559 : vector<2x1xi1>, vector<2x1xf32>
    %561 = arith.addf %553, %560 : vector<2x1xf32>
    %562 = arith.addf %508, %544 : vector<2x1xf32>
    %563 = vector.extract_strided_slice %30 {offsets = [0, 8], sizes = [2, 1], strides = [1, 1]} : vector<2x10xf32> to vector<2x1xf32>
    %564 = arith.select %523, %562, %563 : vector<2x1xf32>
    %565 = arith.addf %511, %561 : vector<2x1xf32>
    %566 = vector.extract_strided_slice %35 {offsets = [0, 8], sizes = [2, 1], strides = [1, 1]} : vector<2x10xf32> to vector<2x1xf32>
    %567 = arith.select %523, %565, %566 : vector<2x1xf32>
    %c5_176 = arith.constant 5 : index
    %c9 = arith.constant 9 : index
    %568 = memref.load %arg0[%c5_176, %c9] : memref<6x10xf32, #tpu.memory_space<smem>>
    %cst_177 = arith.constant 1.000000e+00 : f32
    %569 = arith.mulf %cst_177, %568 : f32
    %cst_178 = arith.constant 5.000000e-01 : f32
    %570 = arith.mulf %569, %cst_178 : f32
    %cst_179 = arith.constant 2.560000e+01 : f32
    %571 = arith.addf %cst_179, %570 : f32
    %cst_180 = arith.constant 5.000000e-01 : f32
    %572 = arith.mulf %569, %cst_180 : f32
    %cst_181 = arith.constant 4.864000e+02 : f32
    %573 = arith.subf %cst_181, %572 : f32
    %cst_182 = arith.constant 5.000000e-01 : f32
    %574 = arith.mulf %569, %cst_182 : f32
    %cst_183 = arith.constant 1.920000e+01 : f32
    %575 = arith.addf %cst_183, %574 : f32
    %cst_184 = arith.constant 5.000000e-01 : f32
    %576 = arith.mulf %569, %cst_184 : f32
    %cst_185 = arith.constant 3.648000e+02 : f32
    %577 = arith.subf %cst_185, %576 : f32
    %c9_186 = arith.constant 9 : index
    %578 = memref.load %arg1[%c9_186] : memref<10xf32, #tpu.memory_space<smem>>
    %cst_187 = arith.constant 1.000000e+00 : f32
    %579 = arith.cmpf ole, %578, %cst_187 : f32
    %580 = vector.extract_strided_slice %37 {offsets = [0, 9], sizes = [2, 1], strides = [1, 1]} : vector<2x10xf32> to vector<2x1xf32>
    %581 = vector.extract_strided_slice %39 {offsets = [0, 9], sizes = [2, 1], strides = [1, 1]} : vector<2x10xf32> to vector<2x1xf32>
    %582 = math.absf %580 : vector<2x1xf32>
    %583 = math.absf %581 : vector<2x1xf32>
    %584 = vector.broadcast %571 : f32 to vector<2x1xf32>
    %585 = arith.cmpf olt, %564, %584 : vector<2x1xf32>
    %cst_188 = arith.constant 0.000000e+00 : f32
    %586 = vector.broadcast %cst_188 : f32 to vector<2x1xf32>
    %587 = arith.select %585, %582, %586 : vector<2x1xi1>, vector<2x1xf32>
    %588 = vector.broadcast %573 : f32 to vector<2x1xf32>
    %589 = arith.cmpf ogt, %564, %588 : vector<2x1xf32>
    %cst_189 = arith.constant 0.000000e+00 : f32
    %590 = vector.broadcast %cst_189 : f32 to vector<2x1xf32>
    %591 = arith.select %589, %582, %590 : vector<2x1xi1>, vector<2x1xf32>
    %592 = arith.subf %587, %591 : vector<2x1xf32>
    %593 = vector.broadcast %571 : f32 to vector<2x1xf32>
    %594 = arith.cmpf ogt, %564, %593 : vector<2x1xf32>
    %595 = vector.broadcast %573 : f32 to vector<2x1xf32>
    %596 = arith.cmpf olt, %564, %595 : vector<2x1xf32>
    %597 = arith.andi %594, %596 : vector<2x1xi1>
    %cst_190 = arith.constant 0.000000e+00 : f32
    %598 = vector.broadcast %cst_190 : f32 to vector<2x1xf32>
    %599 = arith.select %597, %580, %598 : vector<2x1xi1>, vector<2x1xf32>
    %600 = arith.addf %592, %599 : vector<2x1xf32>
    %601 = vector.broadcast %575 : f32 to vector<2x1xf32>
    %602 = arith.cmpf olt, %567, %601 : vector<2x1xf32>
    %cst_191 = arith.constant 0.000000e+00 : f32
    %603 = vector.broadcast %cst_191 : f32 to vector<2x1xf32>
    %604 = arith.select %602, %583, %603 : vector<2x1xi1>, vector<2x1xf32>
    %605 = vector.broadcast %577 : f32 to vector<2x1xf32>
    %606 = arith.cmpf ogt, %567, %605 : vector<2x1xf32>
    %cst_192 = arith.constant 0.000000e+00 : f32
    %607 = vector.broadcast %cst_192 : f32 to vector<2x1xf32>
    %608 = arith.select %606, %583, %607 : vector<2x1xi1>, vector<2x1xf32>
    %609 = arith.subf %604, %608 : vector<2x1xf32>
    %610 = vector.broadcast %575 : f32 to vector<2x1xf32>
    %611 = arith.cmpf ogt, %567, %610 : vector<2x1xf32>
    %612 = vector.broadcast %577 : f32 to vector<2x1xf32>
    %613 = arith.cmpf olt, %567, %612 : vector<2x1xf32>
    %614 = arith.andi %611, %613 : vector<2x1xi1>
    %cst_193 = arith.constant 0.000000e+00 : f32
    %615 = vector.broadcast %cst_193 : f32 to vector<2x1xf32>
    %616 = arith.select %614, %581, %615 : vector<2x1xi1>, vector<2x1xf32>
    %617 = arith.addf %609, %616 : vector<2x1xf32>
    %618 = arith.addf %564, %600 : vector<2x1xf32>
    %619 = vector.extract_strided_slice %30 {offsets = [0, 9], sizes = [2, 1], strides = [1, 1]} : vector<2x10xf32> to vector<2x1xf32>
    %620 = arith.select %579, %618, %619 : vector<2x1xf32>
    %621 = arith.addf %567, %617 : vector<2x1xf32>
    %622 = vector.extract_strided_slice %35 {offsets = [0, 9], sizes = [2, 1], strides = [1, 1]} : vector<2x10xf32> to vector<2x1xf32>
    %623 = arith.select %579, %621, %622 : vector<2x1xf32>
    %624 = tpu.concatenate %116, %172, %228, %284, %340, %396, %452, %508, %564, %620 in 1 : vector<2x1xf32>, vector<2x1xf32>, vector<2x1xf32>, vector<2x1xf32>, vector<2x1xf32>, vector<2x1xf32>, vector<2x1xf32>, vector<2x1xf32>, vector<2x1xf32>, vector<2x1xf32> -> vector<2x10xf32>
    %625 = tpu.concatenate %119, %175, %231, %287, %343, %399, %455, %511, %567, %623 in 1 : vector<2x1xf32>, vector<2x1xf32>, vector<2x1xf32>, vector<2x1xf32>, vector<2x1xf32>, vector<2x1xf32>, vector<2x1xf32>, vector<2x1xf32>, vector<2x1xf32>, vector<2x1xf32> -> vector<2x10xf32>
    %626 = arith.addf %624, %57 : vector<2x10xf32>
    %627 = arith.addf %625, %59 : vector<2x10xf32>
    %cst_194 = arith.constant 0.001953125 : f32
    %628 = vector.broadcast %cst_194 : f32 to vector<2x10xf32>
    %629 = arith.mulf %624, %628 : vector<2x10xf32>
    %cst_195 = arith.constant 0.00260416674 : f32
    %630 = vector.broadcast %cst_195 : f32 to vector<2x10xf32>
    %631 = arith.mulf %625, %630 : vector<2x10xf32>
    %632 = vector.shape_cast %16 : vector<1x10xi1> to vector<1x10xi1>
    %633 = vector.broadcast %632 : vector<1x10xi1> to vector<2x10xi1>
    %634 = arith.select %633, %44, %52 : vector<2x10xi1>, vector<2x10xf32>
    %635 = vector.shape_cast %16 : vector<1x10xi1> to vector<1x10xi1>
    %636 = vector.broadcast %635 : vector<1x10xi1> to vector<2x10xi1>
    %637 = arith.select %636, %49, %55 : vector<2x10xi1>, vector<2x10xf32>
    %638 = vector.shape_cast %16 : vector<1x10xi1> to vector<1x10xi1>
    %639 = vector.broadcast %638 : vector<1x10xi1> to vector<2x10xi1>
    %640 = arith.select %639, %626, %624 : vector<2x10xi1>, vector<2x10xf32>
    %cst_196 = arith.constant 0.001953125 : f32
    %641 = vector.broadcast %cst_196 : f32 to vector<2x10xf32>
    %642 = arith.mulf %640, %641 : vector<2x10xf32>
    %643 = vector.shape_cast %16 : vector<1x10xi1> to vector<1x10xi1>
    %644 = vector.broadcast %643 : vector<1x10xi1> to vector<2x10xi1>
    %645 = arith.select %644, %627, %625 : vector<2x10xi1>, vector<2x10xf32>
    %cst_197 = arith.constant 0.00260416674 : f32
    %646 = vector.broadcast %cst_197 : f32 to vector<2x10xf32>
    %647 = arith.mulf %645, %646 : vector<2x10xf32>
    %648 = vector.shape_cast %629 : vector<2x10xf32> to vector<1x2x10xf32>
    %649 = vector.shape_cast %631 : vector<2x10xf32> to vector<1x2x10xf32>
    %650 = vector.shape_cast %634 : vector<2x10xf32> to vector<1x2x10xf32>
    %651 = vector.shape_cast %637 : vector<2x10xf32> to vector<1x2x10xf32>
    %652 = vector.shape_cast %642 : vector<2x10xf32> to vector<1x2x10xf32>
    %653 = vector.shape_cast %647 : vector<2x10xf32> to vector<1x2x10xf32>
    %654 = tpu.concatenate %648, %649, %650, %651, %652, %653 in 0 : vector<1x2x10xf32>, vector<1x2x10xf32>, vector<1x2x10xf32>, vector<1x2x10xf32>, vector<1x2x10xf32>, vector<1x2x10xf32> -> vector<6x2x10xf32>
    %c0_198 = arith.constant 0 : index
    %c0_199 = arith.constant 0 : index
    %c0_200 = arith.constant 0 : index
    %655 = vector.load %arg6[%c0_198, %c0_199, %c0_200] : memref<6x2x10xf32, #tpu.memory_space<vmem>>, vector<6x2x10xf32>
    tpu.vector_store %arg6[%c0_198, %c0_199, %c0_200], %654 {strides = array<i32>} : memref<6x2x10xf32, #tpu.memory_space<vmem>>, vector<6x2x10xf32>,
    return
  }
}

</mosaic_0001>

<llo_original>
// kernel: tpu_custom_call.1
$region0: #{tpu_custom_call.1}
  #allocation0 [shape = 'u32[]', space=smem, size = 0x4, offset = 0x4, fixed_abs, tag = 'smem constant byte address 0x4 - core index']
  #allocation1 [shape = 'u32[144,128]{1,0:T(1,128)}', space=vmem, size = 0x12000, scoped, tag = 'internal scratch']
  %s0 = inlined_call_operand.hbm [shape: f32[6,10], index: 0, kind: input, shape index: {}]
  %s1 = inlined_call_operand.vmem [shape: f32[10], index: 1, kind: input, shape index: {}]
  %s2 = inlined_call_operand.hbm [shape: f32[2], index: 2, kind: input, shape index: {}]
  %s3 = inlined_call_operand.vmem [shape: f32[6,10], index: 3, kind: input, shape index: {}]
  %s4 = inlined_call_operand.vmem [shape: f32[1,10], index: 4, kind: input, shape index: {}]
  %s5 = inlined_call_operand.vmem [shape: f32[2,40], index: 5, kind: input, shape index: {}]
  %s6 = inlined_call_operand.hbm [shape: f32[6,2,10], index: 6, kind: output, shape index: {}]
  %s7 = sld [smem:[#allocation0]]
  $region46: #{tpu_custom_call.1} parent=0
    _
  %s9 = ssub.s32 1, %s7
  %s10 = scalar_select 0, %s9, %s7
  $region1: #{tpu_custom_call.1} parent=0
    #allocation2 [shape = 'u8[4096]{0}', space=smem, size = 0x1000, scoped, tag = 'input window, operand 0, single buffered']
    #allocation3 [shape = 's32[1]{0}', space=sflag, size = 0x4, scoped, tag = 'scoped memory for tpu_custom_call.1']
    #allocation4 [shape = 's32[1]{0}', space=sflag, size = 0x4, scoped, tag = 'scoped memory for tpu_custom_call.1']
    #allocation5 [shape = 's32[1]{0}', space=sflag, size = 0x4, scoped, tag = 'scoped memory for tpu_custom_call.1']
    #allocation6 [shape = 'u8[512]{0}', space=smem, size = 0x200, scoped, tag = 'input window, operand 1, single buffered']
    #allocation7 [shape = 'u8[512]{0}', space=smem, size = 0x200, scoped, tag = 'input window, operand 2, single buffered']
    #allocation8 [shape = 's32[1]{0}', space=sflag, size = 0x4, scoped, tag = 'scoped memory for tpu_custom_call.1']
    #allocation9 [shape = 'u8[6144]{0}', space=vmem, size = 0x1800, scoped, tag = 'output window, operand 0, single buffered']
    %11 = vsyncpa [#allocation4], 0
    %12 = vsyncpa [#allocation5], 0
    %13 = vsyncpa [#allocation8], 0
    %14 = vsyncpa [#allocation3], 0
    // Predicated region
    $region2: #{tpu_custom_call.1} parent=1 // pred_check
      _
    $region3: #{tpu_custom_call.1} parent=1 // pred_check_branch
      %16 = sbr.rel (0) target = $region5
    $region4: #{tpu_custom_call.1} parent=1 // pred_region
      %s18 = ssub.s32 128, 128
      %19 = vsyncadd [#allocation4], %s18
      %22 = dma.hbm_to_smem %s0, 128, [#allocation2], [#allocation4]
    $region5: #{tpu_custom_call.1} parent=1 // pred_fallthru
      _
    // Predicated region
    $region6: #{tpu_custom_call.1} parent=1 // pred_check
      _
    $region7: #{tpu_custom_call.1} parent=1 // pred_check_branch
      %24 = sbr.rel (0) target = $region9
    $region8: #{tpu_custom_call.1} parent=1 // pred_region
      %s26 = ssub.s32 16, 16
      %27 = vsyncadd [#allocation5], %s26
      %s29 = sshll.u32 %s1, 4
      %s30 = int_to_ptr.vmem [resolvable:$true] %s29
      %32 = dma.vmem_to_smem %s30, 16, [#allocation6], [#allocation5]
    $region9: #{tpu_custom_call.1} parent=1 // pred_fallthru
      _
    // Predicated region
    $region10: #{tpu_custom_call.1} parent=1 // pred_check
      _
    $region11: #{tpu_custom_call.1} parent=1 // pred_check_branch
      %34 = sbr.rel (0) target = $region13
    $region12: #{tpu_custom_call.1} parent=1 // pred_region
      %s36 = ssub.s32 16, 16
      %37 = vsyncadd [#allocation8], %s36
      %40 = dma.hbm_to_smem %s2, 16, [#allocation7], [#allocation8]
    $region13: #{tpu_custom_call.1} parent=1 // pred_fallthru
      _
    // Predicated region
    $region14: #{tpu_custom_call.1} parent=1 // pred_check
      _
    $region15: #{tpu_custom_call.1} parent=1 // pred_check_branch
      %42 = sbr.rel (0) target = $region17
    $region16: #{tpu_custom_call.1} parent=1 // pred_region
      _
    $region17: #{tpu_custom_call.1} parent=1 // pred_fallthru
      _
    // Predicated region
    $region18: #{tpu_custom_call.1} parent=1 // pred_check
      _
    $region19: #{tpu_custom_call.1} parent=1 // pred_check_branch
      %44 = sbr.rel (0) target = $region21
    $region20: #{tpu_custom_call.1} parent=1 // pred_region
      _
    $region21: #{tpu_custom_call.1} parent=1 // pred_fallthru
      _
    // Predicated region
    $region22: #{tpu_custom_call.1} parent=1 // pred_check
      _
    $region23: #{tpu_custom_call.1} parent=1 // pred_check_branch
      %46 = sbr.rel (0) target = $region25
    $region24: #{tpu_custom_call.1} parent=1 // pred_region
      _
    $region25: #{tpu_custom_call.1} parent=1 // pred_fallthru
      _
    // Predicated region
    $region26: #{tpu_custom_call.1} parent=1 // pred_check
      _
    $region27: #{tpu_custom_call.1} parent=1 // pred_check_branch
      %48 = sbr.rel (0) target = $region29
    $region28: #{tpu_custom_call.1} parent=1 // pred_region
      %49 = dma.done [#allocation4], 128
    $region29: #{tpu_custom_call.1} parent=1 // pred_fallthru
      _
    // Predicated region
    $region30: #{tpu_custom_call.1} parent=1 // pred_check
      _
    $region31: #{tpu_custom_call.1} parent=1 // pred_check_branch
      %51 = sbr.rel (0) target = $region33
    $region32: #{tpu_custom_call.1} parent=1 // pred_region
      %52 = dma.done [#allocation5], 16
    $region33: #{tpu_custom_call.1} parent=1 // pred_fallthru
      _
    // Predicated region
    $region34: #{tpu_custom_call.1} parent=1 // pred_check
      _
    $region35: #{tpu_custom_call.1} parent=1 // pred_check_branch
      %54 = sbr.rel (0) target = $region37
    $region36: #{tpu_custom_call.1} parent=1 // pred_region
      %55 = dma.done [#allocation8], 16
    $region37: #{tpu_custom_call.1} parent=1 // pred_fallthru
      _
    %56 = sfence
    %v57 = vld [vmem:[%s5] sm:$0x3]
    %v58 = vmul.f32 %v57, %v57
    %60 = vrot.lane.b32.xlu0 %v58, 108
    %v61 = vpop.permute.xlu0 %60
    %v63 = vadd.f32 %v58, %v61
    %v64 = vrsqrt.pop %v63
    %v65 = vmul.f32 %v57, %v64
    %67 = vrot.lane.b32.xlu0 %v64, 20
    %v68 = vpop.permute.xlu0 %67
    %v70 = vmul.f32 %v57, %v68
    %v71 = vld [vmem:[%s3] sm:$0x3f]
    %vm72 = vcmp.ne.f32.partialorder %v71, 0.0
    %v73 = vld [vmem:[%s4] sm:$0x1]
    %vm74 = vcmp.le.f32.partialorder %v73, 1.0
    %v75 = vmul.f32 %v57, 256.0
    %v76 = vadd.f32 %v75, 256.0
    %v77 = vmul.f32 %v57, 192.0
    %v78 = vadd.f32 %v77, 192.0
    %v79 = vlaneseq
    %v80 = vshrl.u32 %v79, 7
    %v81 = vsub.s32 5, %v80
    %v82 = vrot.slane %v71, %v81
    %v83 = vmul.f32 %v82, %v65
    %85 = vrot.lane.b32.xlu0 %v70, 108
    %v86 = vpop.permute.xlu0 %85
    %v88 = vmul.f32 %v82, %v86
    %v89 = vlaneseq
    %v90 = vshrl.u32 %v89, 7
    %v91 = vsub.s32 3, %v90
    %v92 = vrot.slane %v71, %v91
    %94 = vrot.lane.b32.xlu0 %v92, 10
    %v95 = vpop.permute.xlu0 %94
    %v97 = vmul.f32 %v65, %v95
    %v98 = vlaneseq
    %v99 = vshrl.u32 %v98, 7
    %v100 = vsub.s32 4, %v99
    %v101 = vrot.slane %v71, %v100
    %103 = vrot.lane.b32.xlu0 %v101, 30
    %v104 = vpop.permute.xlu0 %103
    %v106 = vmul.f32 %v70, %v104
    %108 = vrot.lane.b32.xlu0 %v106, 108
    %v109 = vpop.permute.xlu0 %108
    %v111 = vsub.f32 %v97, %v109
    %112 = vrot.lane.b32.xlu0 %v101, 10
    %v113 = vpop.permute.xlu0 %112
    %v115 = vmul.f32 %v65, %v113
    %116 = vrot.lane.b32.xlu0 %v92, 30
    %v117 = vpop.permute.xlu0 %116
    %v119 = vmul.f32 %v70, %v117
    %121 = vrot.lane.b32.xlu0 %v119, 108
    %v122 = vpop.permute.xlu0 %121
    %v124 = vadd.f32 %v115, %v122
    %v125 = vsel %vm74, 1, 0
    %v126 = vlaneseq
    %v127 = vshrl.u32 %v126, 7
    %v128 = vsub.s32 0, %v127
    %v129 = vrot.slane %v125, %v128
    %vm130 = vcmp.eq.s32.totalorder %v129, 1
    %132 = vrot.lane.b32.xlu0 %v65, 118
    %v133 = vpop.permute.xlu0 %132
    %v135 = vsel %vm130, %v65, %v133
    %136 = vrot.lane.b32.xlu0 %v70, 98
    %v137 = vpop.permute.xlu0 %136
    %v139 = vsel %vm130, %v86, %v137
    %v140 = vlaneseq
    %v141 = vshrl.u32 %v140, 7
    %v142 = vsub.s32 1, %v141
    %v143 = vrot.slane %v71, %v142
    %145 = vrot.lane.b32.xlu0 %v143, 10
    %v146 = vpop.permute.xlu0 %145
    %v148 = vmul.f32 %v65, %v146
    %149 = vrot.lane.b32.xlu0 %v143, 30
    %v150 = vpop.permute.xlu0 %149
    %v152 = vmul.f32 %v70, %v150
    %s153 = sld [smem:[#allocation7]]
    %v154 = vstv %s153
    %s155 = sld [smem:[#allocation7 + $0x1]]
    %v156 = vstv %s155
    %s157 = sld [smem:[#allocation2 + $0x280]]
    %s158 = smul.f32 %s157, 0.5
    %s159 = sadd.f32 %s158, 25.6
    %s160 = ssub.f32 486.4, %s158
    %s161 = sadd.f32 %s158, 19.2
    %s162 = ssub.f32 364.8, %s158
    %s163 = sld [smem:[#allocation6]]
    %p164 = scmp.le.f32.partialorder %s163, 1.0
    %v165 = vand.u32 2147483647, %v83
    %v166 = vand.u32 2147483647, %v88
    %v167 = vstv %s159
    %vm168 = vcmp.lt.f32.partialorder %v154, %v167
    %v169 = vsel %vm168, %v165, 0.0
    %v170 = vstv %s160
    %vm171 = vcmp.gt.f32.partialorder %v154, %v170
    %v172 = vsel %vm171, %v165, 0.0
    %v173 = vsub.f32 %v169, %v172
    %vm174 = vcmp.gt.f32.partialorder %v154, %v167
    %vm175 = vcmp.lt.f32.partialorder %v154, %v170
    %vm176 = vmand %vm174, %vm175
    %v177 = vsel %vm176, %v83, 0.0
    %v178 = vadd.f32 %v173, %v177
    %v179 = vstv %s161
    %vm180 = vcmp.lt.f32.partialorder %v156, %v179
    %v181 = vsel %vm180, %v166, 0.0
    %v182 = vstv %s162
    %vm183 = vcmp.gt.f32.partialorder %v156, %v182
    %v184 = vsel %vm183, %v166, 0.0
    %v185 = vsub.f32 %v181, %v184
    %vm186 = vcmp.gt.f32.partialorder %v156, %v179
    %vm187 = vcmp.lt.f32.partialorder %v156, %v182
    %vm188 = vmand %vm186, %vm187
    %v189 = vsel %vm188, %v88, 0.0
    %v190 = vadd.f32 %v185, %v189
    %v191 = vadd.f32 %v154, %v178
    %s192 = scalar_select %p164, 1, 0
    %v193 = vstv %s192
    %vm194 = vcmp.eq.s32.totalorder %v193, 1
    %v195 = vsel %vm194, %v191, %v76
    %v196 = vadd.f32 %v156, %v190
    %198 = vrot.lane.b32.xlu0 %v78, 108
    %v199 = vpop.permute.xlu0 %198
    %v201 = vsel %vm194, %v196, %v199
    %s202 = sld [smem:[#allocation2 + $0x281]]
    %s203 = smul.f32 %s202, 0.5
    %s204 = sadd.f32 %s203, 25.6
    %s205 = ssub.f32 486.4, %s203
    %s206 = sadd.f32 %s203, 19.2
    %s207 = ssub.f32 364.8, %s203
    %s208 = sld [smem:[#allocation6 + $0x1]]
    %p209 = scmp.le.f32.partialorder %s208, 1.0
    %v210 = vstv %s204
    %vm211 = vcmp.lt.f32.partialorder %v195, %v210
    %213 = vrot.lane.b32.xlu0 %v165, 127
    %v214 = vpop.permute.xlu0 %213
    %v216 = vsel %vm211, %v214, 0.0
    %v217 = vstv %s205
    %vm218 = vcmp.gt.f32.partialorder %v195, %v217
    %v219 = vsel %vm218, %v214, 0.0
    %v220 = vsub.f32 %v216, %v219
    %vm221 = vcmp.gt.f32.partialorder %v195, %v210
    %vm222 = vcmp.lt.f32.partialorder %v195, %v217
    %vm223 = vmand %vm221, %vm222
    %225 = vrot.lane.b32.xlu0 %v83, 127
    %v226 = vpop.permute.xlu0 %225
    %v228 = vsel %vm223, %v226, 0.0
    %v229 = vadd.f32 %v220, %v228
    %v230 = vstv %s206
    %vm231 = vcmp.lt.f32.partialorder %v201, %v230
    %233 = vrot.lane.b32.xlu0 %v166, 127
    %v234 = vpop.permute.xlu0 %233
    %v236 = vsel %vm231, %v234, 0.0
    %v237 = vstv %s207
    %vm238 = vcmp.gt.f32.partialorder %v201, %v237
    %v239 = vsel %vm238, %v234, 0.0
    %v240 = vsub.f32 %v236, %v239
    %vm241 = vcmp.gt.f32.partialorder %v201, %v230
    %vm242 = vcmp.lt.f32.partialorder %v201, %v237
    %vm243 = vmand %vm241, %vm242
    %245 = vrot.lane.b32.xlu0 %v88, 127
    %v246 = vpop.permute.xlu0 %245
    %v248 = vsel %vm243, %v246, 0.0
    %v249 = vadd.f32 %v240, %v248
    %v250 = vadd.f32 %v195, %v229
    %s251 = scalar_select %p209, 1, 0
    %v252 = vstv %s251
    %vm253 = vcmp.eq.s32.totalorder %v252, 1
    %255 = vrot.lane.b32.xlu0 %v76, 127
    %v256 = vpop.permute.xlu0 %255
    %v258 = vsel %vm253, %v250, %v256
    %v259 = vadd.f32 %v201, %v249
    %260 = vrot.lane.b32.xlu0 %v78, 107
    %v261 = vpop.permute.xlu0 %260
    %v263 = vsel %vm253, %v259, %v261
    %s264 = sld [smem:[#allocation2 + $0x282]]
    %s265 = smul.f32 %s264, 0.5
    %s266 = sadd.f32 %s265, 25.6
    %s267 = ssub.f32 486.4, %s265
    %s268 = sadd.f32 %s265, 19.2
    %s269 = ssub.f32 364.8, %s265
    %s270 = sld [smem:[#allocation6 + $0x2]]
    %p271 = scmp.le.f32.partialorder %s270, 1.0
    %v272 = vstv %s266
    %vm273 = vcmp.lt.f32.partialorder %v258, %v272
    %274 = vrot.lane.b32.xlu0 %v165, 126
    %v275 = vpop.permute.xlu0 %274
    %v277 = vsel %vm273, %v275, 0.0
    %v278 = vstv %s267
    %vm279 = vcmp.gt.f32.partialorder %v258, %v278
    %v280 = vsel %vm279, %v275, 0.0
    %v281 = vsub.f32 %v277, %v280
    %vm282 = vcmp.gt.f32.partialorder %v258, %v272
    %vm283 = vcmp.lt.f32.partialorder %v258, %v278
    %vm284 = vmand %vm282, %vm283
    %285 = vrot.lane.b32.xlu0 %v83, 126
    %v286 = vpop.permute.xlu0 %285
    %v288 = vsel %vm284, %v286, 0.0
    %v289 = vadd.f32 %v281, %v288
    %v290 = vstv %s268
    %vm291 = vcmp.lt.f32.partialorder %v263, %v290
    %292 = vrot.lane.b32.xlu0 %v166, 126
    %v293 = vpop.permute.xlu0 %292
    %v295 = vsel %vm291, %v293, 0.0
    %v296 = vstv %s269
    %vm297 = vcmp.gt.f32.partialorder %v263, %v296
    %v298 = vsel %vm297, %v293, 0.0
    %v299 = vsub.f32 %v295, %v298
    %vm300 = vcmp.gt.f32.partialorder %v263, %v290
    %vm301 = vcmp.lt.f32.partialorder %v263, %v296
    %vm302 = vmand %vm300, %vm301
    %303 = vrot.lane.b32.xlu0 %v88, 126
    %v304 = vpop.permute.xlu0 %303
    %v306 = vsel %vm302, %v304, 0.0
    %v307 = vadd.f32 %v299, %v306
    %v308 = vadd.f32 %v258, %v289
    %s309 = scalar_select %p271, 1, 0
    %v310 = vstv %s309
    %vm311 = vcmp.eq.s32.totalorder %v310, 1
    %312 = vrot.lane.b32.xlu0 %v76, 126
    %v313 = vpop.permute.xlu0 %312
    %v315 = vsel %vm311, %v308, %v313
    %v316 = vadd.f32 %v263, %v307
    %317 = vrot.lane.b32.xlu0 %v78, 106
    %v318 = vpop.permute.xlu0 %317
    %v320 = vsel %vm311, %v316, %v318
    %s321 = sld [smem:[#allocation2 + $0x283]]
    %s322 = smul.f32 %s321, 0.5
    %s323 = sadd.f32 %s322, 25.6
    %s324 = ssub.f32 486.4, %s322
    %s325 = sadd.f32 %s322, 19.2
    %s326 = ssub.f32 364.8, %s322
    %s327 = sld [smem:[#allocation6 + $0x3]]
    %p328 = scmp.le.f32.partialorder %s327, 1.0
    %v329 = vstv %s323
    %vm330 = vcmp.lt.f32.partialorder %v315, %v329
    %331 = vrot.lane.b32.xlu0 %v165, 125
    %v332 = vpop.permute.xlu0 %331
    %v334 = vsel %vm330, %v332, 0.0
    %v335 = vstv %s324
    %vm336 = vcmp.gt.f32.partialorder %v315, %v335
    %v337 = vsel %vm336, %v332, 0.0
    %v338 = vsub.f32 %v334, %v337
    %vm339 = vcmp.gt.f32.partialorder %v315, %v329
    %vm340 = vcmp.lt.f32.partialorder %v315, %v335
    %vm341 = vmand %vm339, %vm340
    %342 = vrot.lane.b32.xlu0 %v83, 125
    %v343 = vpop.permute.xlu0 %342
    %v345 = vsel %vm341, %v343, 0.0
    %v346 = vadd.f32 %v338, %v345
    %v347 = vstv %s325
    %vm348 = vcmp.lt.f32.partialorder %v320, %v347
    %349 = vrot.lane.b32.xlu0 %v166, 125
    %v350 = vpop.permute.xlu0 %349
    %v352 = vsel %vm348, %v350, 0.0
    %v353 = vstv %s326
    %vm354 = vcmp.gt.f32.partialorder %v320, %v353
    %v355 = vsel %vm354, %v350, 0.0
    %v356 = vsub.f32 %v352, %v355
    %vm357 = vcmp.gt.f32.partialorder %v320, %v347
    %vm358 = vcmp.lt.f32.partialorder %v320, %v353
    %vm359 = vmand %vm357, %vm358
    %360 = vrot.lane.b32.xlu0 %v88, 125
    %v361 = vpop.permute.xlu0 %360
    %v363 = vsel %vm359, %v361, 0.0
    %v364 = vadd.f32 %v356, %v363
    %v365 = vadd.f32 %v315, %v346
    %s366 = scalar_select %p328, 1, 0
    %v367 = vstv %s366
    %vm368 = vcmp.eq.s32.totalorder %v367, 1
    %369 = vrot.lane.b32.xlu0 %v76, 125
    %v370 = vpop.permute.xlu0 %369
    %v372 = vsel %vm368, %v365, %v370
    %v373 = vadd.f32 %v320, %v364
    %374 = vrot.lane.b32.xlu0 %v78, 105
    %v375 = vpop.permute.xlu0 %374
    %v377 = vsel %vm368, %v373, %v375
    %s378 = sld [smem:[#allocation2 + $0x284]]
    %s379 = smul.f32 %s378, 0.5
    %s380 = sadd.f32 %s379, 25.6
    %s381 = ssub.f32 486.4, %s379
    %s382 = sadd.f32 %s379, 19.2
    %s383 = ssub.f32 364.8, %s379
    %s384 = sld [smem:[#allocation6 + $0x4]]
    %p385 = scmp.le.f32.partialorder %s384, 1.0
    %v386 = vstv %s380
    %vm387 = vcmp.lt.f32.partialorder %v372, %v386
    %388 = vrot.lane.b32.xlu0 %v165, 124
    %v389 = vpop.permute.xlu0 %388
    %v391 = vsel %vm387, %v389, 0.0
    %v392 = vstv %s381
    %vm393 = vcmp.gt.f32.partialorder %v372, %v392
    %v394 = vsel %vm393, %v389, 0.0
    %v395 = vsub.f32 %v391, %v394
    %vm396 = vcmp.gt.f32.partialorder %v372, %v386
    %vm397 = vcmp.lt.f32.partialorder %v372, %v392
    %vm398 = vmand %vm396, %vm397
    %399 = vrot.lane.b32.xlu0 %v83, 124
    %v400 = vpop.permute.xlu0 %399
    %v402 = vsel %vm398, %v400, 0.0
    %v403 = vadd.f32 %v395, %v402
    %v404 = vstv %s382
    %vm405 = vcmp.lt.f32.partialorder %v377, %v404
    %406 = vrot.lane.b32.xlu0 %v166, 124
    %v407 = vpop.permute.xlu0 %406
    %v409 = vsel %vm405, %v407, 0.0
    %v410 = vstv %s383
    %vm411 = vcmp.gt.f32.partialorder %v377, %v410
    %v412 = vsel %vm411, %v407, 0.0
    %v413 = vsub.f32 %v409, %v412
    %vm414 = vcmp.gt.f32.partialorder %v377, %v404
    %vm415 = vcmp.lt.f32.partialorder %v377, %v410
    %vm416 = vmand %vm414, %vm415
    %417 = vrot.lane.b32.xlu0 %v88, 124
    %v418 = vpop.permute.xlu0 %417
    %v420 = vsel %vm416, %v418, 0.0
    %v421 = vadd.f32 %v413, %v420
    %v422 = vadd.f32 %v372, %v403
    %s423 = scalar_select %p385, 1, 0
    %v424 = vstv %s423
    %vm425 = vcmp.eq.s32.totalorder %v424, 1
    %426 = vrot.lane.b32.xlu0 %v76, 124
    %v427 = vpop.permute.xlu0 %426
    %v429 = vsel %vm425, %v422, %v427
    %v430 = vadd.f32 %v377, %v421
    %431 = vrot.lane.b32.xlu0 %v78, 104
    %v432 = vpop.permute.xlu0 %431
    %v434 = vsel %vm425, %v430, %v432
    %s435 = sld [smem:[#allocation2 + $0x285]]
    %s436 = smul.f32 %s435, 0.5
    %s437 = sadd.f32 %s436, 25.6
    %s438 = ssub.f32 486.4, %s436
    %s439 = sadd.f32 %s436, 19.2
    %s440 = ssub.f32 364.8, %s436
    %s441 = sld [smem:[#allocation6 + $0x5]]
    %p442 = scmp.le.f32.partialorder %s441, 1.0
    %v443 = vstv %s437
    %vm444 = vcmp.lt.f32.partialorder %v429, %v443
    %445 = vrot.lane.b32.xlu0 %v165, 123
    %v446 = vpop.permute.xlu0 %445
    %v448 = vsel %vm444, %v446, 0.0
    %v449 = vstv %s438
    %vm450 = vcmp.gt.f32.partialorder %v429, %v449
    %v451 = vsel %vm450, %v446, 0.0
    %v452 = vsub.f32 %v448, %v451
    %vm453 = vcmp.gt.f32.partialorder %v429, %v443
    %vm454 = vcmp.lt.f32.partialorder %v429, %v449
    %vm455 = vmand %vm453, %vm454
    %456 = vrot.lane.b32.xlu0 %v83, 123
    %v457 = vpop.permute.xlu0 %456
    %v459 = vsel %vm455, %v457, 0.0
    %v460 = vadd.f32 %v452, %v459
    %v461 = vstv %s439
    %vm462 = vcmp.lt.f32.partialorder %v434, %v461
    %463 = vrot.lane.b32.xlu0 %v166, 123
    %v464 = vpop.permute.xlu0 %463
    %v466 = vsel %vm462, %v464, 0.0
    %v467 = vstv %s440
    %vm468 = vcmp.gt.f32.partialorder %v434, %v467
    %v469 = vsel %vm468, %v464, 0.0
    %v470 = vsub.f32 %v466, %v469
    %vm471 = vcmp.gt.f32.partialorder %v434, %v461
    %vm472 = vcmp.lt.f32.partialorder %v434, %v467
    %vm473 = vmand %vm471, %vm472
    %474 = vrot.lane.b32.xlu0 %v88, 123
    %v475 = vpop.permute.xlu0 %474
    %v477 = vsel %vm473, %v475, 0.0
    %v478 = vadd.f32 %v470, %v477
    %v479 = vadd.f32 %v429, %v460
    %s480 = scalar_select %p442, 1, 0
    %v481 = vstv %s480
    %vm482 = vcmp.eq.s32.totalorder %v481, 1
    %483 = vrot.lane.b32.xlu0 %v76, 123
    %v484 = vpop.permute.xlu0 %483
    %v486 = vsel %vm482, %v479, %v484
    %v487 = vadd.f32 %v434, %v478
    %488 = vrot.lane.b32.xlu0 %v78, 103
    %v489 = vpop.permute.xlu0 %488
    %v491 = vsel %vm482, %v487, %v489
    %s492 = sld [smem:[#allocation2 + $0x286]]
    %s493 = smul.f32 %s492, 0.5
    %s494 = sadd.f32 %s493, 25.6
    %s495 = ssub.f32 486.4, %s493
    %s496 = sadd.f32 %s493, 19.2
    %s497 = ssub.f32 364.8, %s493
    %s498 = sld [smem:[#allocation6 + $0x6]]
    %p499 = scmp.le.f32.partialorder %s498, 1.0
    %v500 = vstv %s494
    %vm501 = vcmp.lt.f32.partialorder %v486, %v500
    %502 = vrot.lane.b32.xlu0 %v165, 122
    %v503 = vpop.permute.xlu0 %502
    %v505 = vsel %vm501, %v503, 0.0
    %v506 = vstv %s495
    %vm507 = vcmp.gt.f32.partialorder %v486, %v506
    %v508 = vsel %vm507, %v503, 0.0
    %v509 = vsub.f32 %v505, %v508
    %vm510 = vcmp.gt.f32.partialorder %v486, %v500
    %vm511 = vcmp.lt.f32.partialorder %v486, %v506
    %vm512 = vmand %vm510, %vm511
    %513 = vrot.lane.b32.xlu0 %v83, 122
    %v514 = vpop.permute.xlu0 %513
    %v516 = vsel %vm512, %v514, 0.0
    %v517 = vadd.f32 %v509, %v516
    %v518 = vstv %s496
    %vm519 = vcmp.lt.f32.partialorder %v491, %v518
    %520 = vrot.lane.b32.xlu0 %v166, 122
    %v521 = vpop.permute.xlu0 %520
    %v523 = vsel %vm519, %v521, 0.0
    %v524 = vstv %s497
    %vm525 = vcmp.gt.f32.partialorder %v491, %v524
    %v526 = vsel %vm525, %v521, 0.0
    %v527 = vsub.f32 %v523, %v526
    %vm528 = vcmp.gt.f32.partialorder %v491, %v518
    %vm529 = vcmp.lt.f32.partialorder %v491, %v524
    %vm530 = vmand %vm528, %vm529
    %531 = vrot.lane.b32.xlu0 %v88, 122
    %v532 = vpop.permute.xlu0 %531
    %v534 = vsel %vm530, %v532, 0.0
    %v535 = vadd.f32 %v527, %v534
    %v536 = vadd.f32 %v486, %v517
    %s537 = scalar_select %p499, 1, 0
    %v538 = vstv %s537
    %vm539 = vcmp.eq.s32.totalorder %v538, 1
    %540 = vrot.lane.b32.xlu0 %v76, 122
    %v541 = vpop.permute.xlu0 %540
    %v543 = vsel %vm539, %v536, %v541
    %v544 = vadd.f32 %v491, %v535
    %545 = vrot.lane.b32.xlu0 %v78, 102
    %v546 = vpop.permute.xlu0 %545
    %v548 = vsel %vm539, %v544, %v546
    %s549 = sld [smem:[#allocation2 + $0x287]]
    %s550 = smul.f32 %s549, 0.5
    %s551 = sadd.f32 %s550, 25.6
    %s552 = ssub.f32 486.4, %s550
    %s553 = sadd.f32 %s550, 19.2
    %s554 = ssub.f32 364.8, %s550
    %s555 = sld [smem:[#allocation6 + $0x7]]
    %p556 = scmp.le.f32.partialorder %s555, 1.0
    %v557 = vstv %s551
    %vm558 = vcmp.lt.f32.partialorder %v543, %v557
    %559 = vrot.lane.b32.xlu0 %v165, 121
    %v560 = vpop.permute.xlu0 %559
    %v562 = vsel %vm558, %v560, 0.0
    %v563 = vstv %s552
    %vm564 = vcmp.gt.f32.partialorder %v543, %v563
    %v565 = vsel %vm564, %v560, 0.0
    %v566 = vsub.f32 %v562, %v565
    %vm567 = vcmp.gt.f32.partialorder %v543, %v557
    %vm568 = vcmp.lt.f32.partialorder %v543, %v563
    %vm569 = vmand %vm567, %vm568
    %570 = vrot.lane.b32.xlu0 %v83, 121
    %v571 = vpop.permute.xlu0 %570
    %v573 = vsel %vm569, %v571, 0.0
    %v574 = vadd.f32 %v566, %v573
    %v575 = vstv %s553
    %vm576 = vcmp.lt.f32.partialorder %v548, %v575
    %577 = vrot.lane.b32.xlu0 %v166, 121
    %v578 = vpop.permute.xlu0 %577
    %v580 = vsel %vm576, %v578, 0.0
    %v581 = vstv %s554
    %vm582 = vcmp.gt.f32.partialorder %v548, %v581
    %v583 = vsel %vm582, %v578, 0.0
    %v584 = vsub.f32 %v580, %v583
    %vm585 = vcmp.gt.f32.partialorder %v548, %v575
    %vm586 = vcmp.lt.f32.partialorder %v548, %v581
    %vm587 = vmand %vm585, %vm586
    %588 = vrot.lane.b32.xlu0 %v88, 121
    %v589 = vpop.permute.xlu0 %588
    %v591 = vsel %vm587, %v589, 0.0
    %v592 = vadd.f32 %v584, %v591
    %v593 = vadd.f32 %v543, %v574
    %s594 = scalar_select %p556, 1, 0
    %v595 = vstv %s594
    %vm596 = vcmp.eq.s32.totalorder %v595, 1
    %597 = vrot.lane.b32.xlu0 %v76, 121
    %v598 = vpop.permute.xlu0 %597
    %v600 = vsel %vm596, %v593, %v598
    %v601 = vadd.f32 %v548, %v592
    %602 = vrot.lane.b32.xlu0 %v78, 101
    %v603 = vpop.permute.xlu0 %602
    %v605 = vsel %vm596, %v601, %v603
    %s606 = sld [smem:[#allocation2 + $0x288]]
    %s607 = smul.f32 %s606, 0.5
    %s608 = sadd.f32 %s607, 25.6
    %s609 = ssub.f32 486.4, %s607
    %s610 = sadd.f32 %s607, 19.2
    %s611 = ssub.f32 364.8, %s607
    %s612 = sld [smem:[#allocation6 + $0x8]]
    %p613 = scmp.le.f32.partialorder %s612, 1.0
    %v614 = vstv %s608
    %vm615 = vcmp.lt.f32.partialorder %v600, %v614
    %616 = vrot.lane.b32.xlu0 %v165, 120
    %v617 = vpop.permute.xlu0 %616
    %v619 = vsel %vm615, %v617, 0.0
    %v620 = vstv %s609
    %vm621 = vcmp.gt.f32.partialorder %v600, %v620
    %v622 = vsel %vm621, %v617, 0.0
    %v623 = vsub.f32 %v619, %v622
    %vm624 = vcmp.gt.f32.partialorder %v600, %v614
    %vm625 = vcmp.lt.f32.partialorder %v600, %v620
    %vm626 = vmand %vm624, %vm625
    %627 = vrot.lane.b32.xlu0 %v83, 120
    %v628 = vpop.permute.xlu0 %627
    %v630 = vsel %vm626, %v628, 0.0
    %v631 = vadd.f32 %v623, %v630
    %v632 = vstv %s610
    %vm633 = vcmp.lt.f32.partialorder %v605, %v632
    %634 = vrot.lane.b32.xlu0 %v166, 120
    %v635 = vpop.permute.xlu0 %634
    %v637 = vsel %vm633, %v635, 0.0
    %v638 = vstv %s611
    %vm639 = vcmp.gt.f32.partialorder %v605, %v638
    %v640 = vsel %vm639, %v635, 0.0
    %v641 = vsub.f32 %v637, %v640
    %vm642 = vcmp.gt.f32.partialorder %v605, %v632
    %vm643 = vcmp.lt.f32.partialorder %v605, %v638
    %vm644 = vmand %vm642, %vm643
    %645 = vrot.lane.b32.xlu0 %v88, 120
    %v646 = vpop.permute.xlu0 %645
    %v648 = vsel %vm644, %v646, 0.0
    %v649 = vadd.f32 %v641, %v648
    %v650 = vadd.f32 %v600, %v631
    %s651 = scalar_select %p613, 1, 0
    %v652 = vstv %s651
    %vm653 = vcmp.eq.s32.totalorder %v652, 1
    %654 = vrot.lane.b32.xlu0 %v76, 120
    %v655 = vpop.permute.xlu0 %654
    %v657 = vsel %vm653, %v650, %v655
    %v658 = vadd.f32 %v605, %v649
    %659 = vrot.lane.b32.xlu0 %v78, 100
    %v660 = vpop.permute.xlu0 %659
    %v662 = vsel %vm653, %v658, %v660
    %s663 = sld [smem:[#allocation2 + $0x289]]
    %s664 = smul.f32 %s663, 0.5
    %s665 = sadd.f32 %s664, 25.6
    %s666 = ssub.f32 486.4, %s664
    %s667 = sadd.f32 %s664, 19.2
    %s668 = ssub.f32 364.8, %s664
    %s669 = sld [smem:[#allocation6 + $0x9]]
    %p670 = scmp.le.f32.partialorder %s669, 1.0
    %v671 = vstv %s665
    %vm672 = vcmp.lt.f32.partialorder %v657, %v671
    %673 = vrot.lane.b32.xlu0 %v165, 119
    %v674 = vpop.permute.xlu0 %673
    %v676 = vsel %vm672, %v674, 0.0
    %v677 = vstv %s666
    %vm678 = vcmp.gt.f32.partialorder %v657, %v677
    %v679 = vsel %vm678, %v674, 0.0
    %v680 = vsub.f32 %v676, %v679
    %vm681 = vcmp.gt.f32.partialorder %v657, %v671
    %vm682 = vcmp.lt.f32.partialorder %v657, %v677
    %vm683 = vmand %vm681, %vm682
    %684 = vrot.lane.b32.xlu0 %v83, 119
    %v685 = vpop.permute.xlu0 %684
    %v687 = vsel %vm683, %v685, 0.0
    %v688 = vadd.f32 %v680, %v687
    %v689 = vstv %s667
    %vm690 = vcmp.lt.f32.partialorder %v662, %v689
    %691 = vrot.lane.b32.xlu0 %v166, 119
    %v692 = vpop.permute.xlu0 %691
    %v694 = vsel %vm690, %v692, 0.0
    %v695 = vstv %s668
    %vm696 = vcmp.gt.f32.partialorder %v662, %v695
    %v697 = vsel %vm696, %v692, 0.0
    %v698 = vsub.f32 %v694, %v697
    %vm699 = vcmp.gt.f32.partialorder %v662, %v689
    %vm700 = vcmp.lt.f32.partialorder %v662, %v695
    %vm701 = vmand %vm699, %vm700
    %702 = vrot.lane.b32.xlu0 %v88, 119
    %v703 = vpop.permute.xlu0 %702
    %v705 = vsel %vm701, %v703, 0.0
    %v706 = vadd.f32 %v698, %v705
    %v707 = vadd.f32 %v657, %v688
    %s708 = scalar_select %p670, 1, 0
    %v709 = vstv %s708
    %vm710 = vcmp.eq.s32.totalorder %v709, 1
    %711 = vrot.lane.b32.xlu0 %v76, 119
    %v712 = vpop.permute.xlu0 %711
    %v714 = vsel %vm710, %v707, %v712
    %v715 = vadd.f32 %v662, %v706
    %716 = vrot.lane.b32.xlu0 %v78, 99
    %v717 = vpop.permute.xlu0 %716
    %v719 = vsel %vm710, %v715, %v717
    %721 = vrot.lane.b32.xlu0 %v258, 1
    %v722 = vpop.permute.xlu0 %721
    %725 = vrot.lane.b32.xlu0 %v315, 2
    %v726 = vpop.permute.xlu0 %725
    %729 = vrot.lane.b32.xlu0 %v372, 3
    %v730 = vpop.permute.xlu0 %729
    %733 = vrot.lane.b32.xlu0 %v429, 4
    %v734 = vpop.permute.xlu0 %733
    %737 = vrot.lane.b32.xlu0 %v486, 5
    %v738 = vpop.permute.xlu0 %737
    %741 = vrot.lane.b32.xlu0 %v543, 6
    %v742 = vpop.permute.xlu0 %741
    %745 = vrot.lane.b32.xlu0 %v600, 7
    %v746 = vpop.permute.xlu0 %745
    %749 = vrot.lane.b32.xlu0 %v657, 8
    %v750 = vpop.permute.xlu0 %749
    %753 = vrot.lane.b32.xlu0 %v714, 9
    %v754 = vpop.permute.xlu0 %753
    %vm756 = vcmask 7168
    %v757 = vsel %vm756, %v195, %v722
    %vm758 = vcmask 15360
    %v759 = vsel %vm758, %v757, %v726
    %vm760 = vcmask 23552
    %v761 = vsel %vm760, %v759, %v730
    %vm762 = vcmask 31744
    %v763 = vsel %vm762, %v761, %v734
    %vm764 = vcmask 39936
    %v765 = vsel %vm764, %v763, %v738
    %vm766 = vcmask 48128
    %v767 = vsel %vm766, %v765, %v742
    %vm768 = vcmask 56320
    %v769 = vsel %vm768, %v767, %v746
    %vm770 = vcmask 64512
    %v771 = vsel %vm770, %v769, %v750
    %vm772 = vcmask 72704
    %v773 = vsel %vm772, %v771, %v754
    %775 = vrot.lane.b32.xlu0 %v263, 1
    %v776 = vpop.permute.xlu0 %775
    %779 = vrot.lane.b32.xlu0 %v320, 2
    %v780 = vpop.permute.xlu0 %779
    %783 = vrot.lane.b32.xlu0 %v377, 3
    %v784 = vpop.permute.xlu0 %783
    %787 = vrot.lane.b32.xlu0 %v434, 4
    %v788 = vpop.permute.xlu0 %787
    %791 = vrot.lane.b32.xlu0 %v491, 5
    %v792 = vpop.permute.xlu0 %791
    %795 = vrot.lane.b32.xlu0 %v548, 6
    %v796 = vpop.permute.xlu0 %795
    %799 = vrot.lane.b32.xlu0 %v605, 7
    %v800 = vpop.permute.xlu0 %799
    %803 = vrot.lane.b32.xlu0 %v662, 8
    %v804 = vpop.permute.xlu0 %803
    %807 = vrot.lane.b32.xlu0 %v719, 9
    %v808 = vpop.permute.xlu0 %807
    %v810 = vsel %vm756, %v201, %v776
    %v811 = vsel %vm758, %v810, %v780
    %v812 = vsel %vm760, %v811, %v784
    %v813 = vsel %vm762, %v812, %v788
    %v814 = vsel %vm764, %v813, %v792
    %v815 = vsel %vm766, %v814, %v796
    %v816 = vsel %vm768, %v815, %v800
    %v817 = vsel %vm770, %v816, %v804
    %v818 = vsel %vm772, %v817, %v808
    %820 = vrot.lane.b32.xlu0 %v148, 118
    %v821 = vpop.permute.xlu0 %820
    %v823 = vadd.f32 %v773, %v821
    %825 = vrot.lane.b32.xlu0 %v152, 98
    %v826 = vpop.permute.xlu0 %825
    %v828 = vadd.f32 %v818, %v826
    %v829 = vmul.f32 %v773, 0.001953125
    %v830 = vmul.f32 %v818, 0.0026041667
    %v831 = vsel %vm72, 1, 0
    %v832 = vlaneseq
    %v833 = vshrl.u32 %v832, 7
    %v834 = vsub.s32 0, %v833
    %v835 = vrot.slane %v831, %v834
    %vm836 = vcmp.eq.s32.totalorder %v835, 1
    %838 = vrot.lane.b32.xlu0 %v111, 118
    %v839 = vpop.permute.xlu0 %838
    %v841 = vsel %vm836, %v839, %v135
    %843 = vrot.lane.b32.xlu0 %v124, 118
    %v844 = vpop.permute.xlu0 %843
    %v846 = vsel %vm836, %v844, %v139
    %v847 = vsel %vm836, %v823, %v773
    %v848 = vmul.f32 %v847, 0.001953125
    %v849 = vsel %vm836, %v828, %v818
    %v850 = vmul.f32 %v849, 0.0026041667
    %vm851 = vcmask 74752
    %852 = vst.msk [vmem:[#allocation9] sm:$0x3] %vm851, %v829
    %853 = vst.msk [vmem:[#allocation9 + $0x2] sm:$0x3] %vm851, %v830
    %854 = vst.msk [vmem:[#allocation9 + $0x4] sm:$0x3] %vm851, %v841
    %855 = vst.msk [vmem:[#allocation9 + $0x6] sm:$0x3] %vm851, %v846
    %856 = vst.msk [vmem:[#allocation9 + $0x8] sm:$0x3] %vm851, %v848
    %857 = vst.msk [vmem:[#allocation9 + $0xa] sm:$0x3] %vm851, %v850
    // Predicated region
    $region38: #{tpu_custom_call.1} parent=1 // pred_check
      _
    $region39: #{tpu_custom_call.1} parent=1 // pred_check_branch
      %859 = sbr.rel (0) target = $region41
    $region40: #{tpu_custom_call.1} parent=1 // pred_region
      %s861 = ssub.s32 192, 192
      %862 = vsyncadd [#allocation3], %s861
      %s863 = sshll.u32 [#allocation9], 4
      %s864 = int_to_ptr.vmem [resolvable:$true] %s863
      %869 = dma.vmem_to_hbm [thread:$0]  %s864, 192, %s6, [#allocation3], 32, 32, 2
    $region41: #{tpu_custom_call.1} parent=1 // pred_fallthru
      _
    // Predicated region
    $region42: #{tpu_custom_call.1} parent=1 // pred_check
      _
    $region43: #{tpu_custom_call.1} parent=1 // pred_check_branch
      %871 = sbr.rel (0) target = $region45
    $region44: #{tpu_custom_call.1} parent=1 // pred_region
      %872 = dma.done [#allocation3], 192
    $region45: #{tpu_custom_call.1} parent=1 // pred_fallthru
      _
    %873 = vsyncpa [#allocation3], 1
    %874 = vsyncpa [#allocation4], 1
    %875 = vsyncpa [#allocation8], 1
    %876 = vsyncpa [#allocation5], 1

</llo_original>
